<compile_context>
chip_gen: v7x
topology: tpu7x:2x2x1
jax: 0.10.0
libtpu: 0.0.40
codegen_flags: <defaults>
</compile_context>

<pallas_src>
import functools
import math

import jax
import jax.numpy as jnp
from jax.experimental import pallas as pl
from jax.experimental.pallas import tpu as pltpu


def _round_up(x, m):
    return (x + m - 1) // m * m


def _lm_kernel(x_ref, wqkv_ref, bqkv_ref, wo_ref, bo_ref, wlm_ref, blm_ref,
               logits_ref, act_sc, *, t):
    """Grid = (batch_blocks, vocab_tiles).

    j == 0 : fused QKV + single-head attention + output projection for this
             batch block; activation parked in VMEM scratch (rows, H) bf16.
    all j  : one (H, TILE_V) LM-head slice against the cached activation.
    """
    j = pl.program_id(1)
    rows, h = x_ref.shape
    b_blk = rows // t

    @pl.when(j == 0)
    def _():
        x = x_ref[...]                                           # bf16 (rows, H)

        # Fused QKV projection: one wide (H, 3H) bf16 matmul, f32 accumulate.
        qkv = jnp.dot(x, wqkv_ref[...], preferred_element_type=jnp.float32)
        qkv = qkv + bqkv_ref[0]
        q = qkv[:, :h].astype(jnp.bfloat16).reshape(b_blk, t, h)
        k = qkv[:, h:2 * h].astype(jnp.bfloat16).reshape(b_blk, t, h)
        v = qkv[:, 2 * h:].astype(jnp.bfloat16).reshape(b_blk, t, h)

        # Single-head attention (head_size == hidden_size). The 1/sqrt(H)
        # scale is folded into the Q weights at pack time. NOTE: PyTorch's
        # masked_fill(ones(T,T)==0, -inf) masks nothing -> plain softmax.
        s = jnp.einsum("bqd,bkd->bqk", q, k,
                       preferred_element_type=jnp.float32)
        s = s - jnp.max(s, axis=-1, keepdims=True)
        p = jnp.exp(s)
        p = p * pl.reciprocal(jnp.sum(p, axis=-1, keepdims=True), approx=True)
        o = jnp.einsum("bqk,bkd->bqd", p.astype(jnp.bfloat16), v,
                       preferred_element_type=jnp.float32)

        out = jnp.dot(o.astype(jnp.bfloat16).reshape(rows, h), wo_ref[...],
                      preferred_element_type=jnp.float32) + bo_ref[0]
        act_sc[...] = out.astype(act_sc.dtype)

    # Per-vocab-tile LM head on the cached (bf16) activation; lane-dense store.
    logits_ref[...] = (jnp.dot(act_sc[...], wlm_ref[...],
                               preferred_element_type=jnp.float32)
                       + blm_ref[0]).astype(logits_ref.dtype)


def pack_params(params):
    """One-time weight packing: QKV fusion, scale folding, vocab padding, bf16."""
    H = params["tok_emb"].shape[1]
    V = params["w_lm"].shape[1]
    V_pad = _round_up(V, 128)
    scale = 1.0 / math.sqrt(H)

    w_qkv = jnp.concatenate(
        [params["w_q"] * scale, params["w_k"], params["w_v"]], axis=1)
    b_qkv = jnp.concatenate(
        [params["b_q"] * scale, params["b_k"], params["b_v"]], axis=1)

    w_lm, b_lm = params["w_lm"], params["b_lm"]
    if V_pad != V:
        w_lm = jnp.pad(w_lm, ((0, 0), (0, V_pad - V)))
        b_lm = jnp.pad(b_lm, ((0, 0), (0, V_pad - V)))

    return {
        "tok_emb": params["tok_emb"].astype(jnp.bfloat16),
        "pos_emb": params["pos_emb"].astype(jnp.bfloat16),
        "w_qkv": w_qkv.astype(jnp.bfloat16),
        "b_qkv": b_qkv.astype(jnp.float32),
        "w_o": params["w_o"].astype(jnp.bfloat16),
        "b_o": params["b_o"].astype(jnp.float32),
        "w_lm": w_lm.astype(jnp.bfloat16),
        "b_lm": b_lm.astype(jnp.float32),
        "vocab_size": V,
    }


def language_model_forward(idx, packed, targets=None, *, b_blk=None, tile_v=None):
    """Forward pass. Returns (logits, loss); loss is None when targets is None."""
    B, T = idx.shape
    H = packed["tok_emb"].shape[1]
    V = packed["vocab_size"]
    V_pad = packed["w_lm"].shape[1]

    # ---- glue (plain JAX, fused by XLA into one pass): gather + pos add ----
    # TODO(synk): move the token-embedding gather in-kernel (scalar-prefetched
    # idx + DMA gather) to save the (B,T,H) HBM round trip.
    x = (jnp.take(packed["tok_emb"], idx, axis=0)
         + packed["pos_emb"][:T]).reshape(B * T, H)               # bf16 (B*T, H)

    # Batch blocking: default is a single block (W_lm streamed exactly once --
    # it is the dominant HBM read). On v7x (2 TCs) pass b_blk = B // 2 so the
    # "parallel" batch axis lands work on both cores.
    if b_blk is None:
        b_blk = B
    assert B % b_blk == 0, "b_blk must divide B"
    rows = b_blk * T
    assert b_blk == B or rows % 8 == 0, "batch-block rows must be sublane-aligned"

    # Vocab tile: lane-dense multiple of 128, capped so (H, tile_v) weight +
    # double-buffered logits block fit comfortably in v7x's 64 MiB VMEM as well
    # as v5e's small default scoped limit (raise tile_v on v6e if desired).
    if tile_v is None:
        if V_pad <= 1024:
            tile_v = V_pad
        else:
            tile_v = 128
            for cand in (1024, 512, 256, 128):
                if V_pad % cand == 0:
                    tile_v = cand
                    break
    assert V_pad % tile_v == 0, "tile_v must divide padded vocab"

    grid = (B // b_blk, V_pad // tile_v)

    # Explicit VMEM budget (scratch + pipelined blocks + single-buffered weights).
    est = (rows * H * 2                                    # bf16 scratch
           + 2 * rows * H * 2                              # x block (double buf)
           + (H * 3 * H + H * H) * 2 + (3 * H + H) * 4     # weights + biases
           + 2 * (H * tile_v * 2 + tile_v * 4)             # W_lm/b_lm tiles
           + 2 * rows * tile_v * 4)                        # logits blocks
    vmem_limit = int(min(max(2 * est, 8 << 20), 100 << 20))

    kernel = functools.partial(_lm_kernel, t=T)

    def run(single_buffer_weights):
        wmode = ({"pipeline_mode": pl.Buffered(buffer_count=1)}
                 if single_buffer_weights else {})
        in_specs = [
            pl.BlockSpec((rows, H), lambda b, j: (b, 0)),             # x
            pl.BlockSpec((H, 3 * H), lambda b, j: (0, 0), **wmode),   # W_qkv
            pl.BlockSpec((1, 3 * H), lambda b, j: (0, 0), **wmode),   # b_qkv
            pl.BlockSpec((H, H), lambda b, j: (0, 0), **wmode),       # W_o
            pl.BlockSpec((1, H), lambda b, j: (0, 0), **wmode),       # b_o
            pl.BlockSpec((H, tile_v), lambda b, j: (0, j)),           # W_lm tile
            pl.BlockSpec((1, tile_v), lambda b, j: (0, j)),           # b_lm tile
        ]
        return pl.pallas_call(
            kernel,
            out_shape=jax.ShapeDtypeStruct((B * T, V_pad), jnp.float32),
            grid_spec=pltpu.PrefetchScalarGridSpec(
                num_scalar_prefetch=0,
                grid=grid,
                in_specs=in_specs,
                out_specs=pl.BlockSpec((rows, tile_v), lambda b, j: (b, j)),
                scratch_shapes=[pltpu.VMEM((rows, H), jnp.bfloat16)],
            ),
            compiler_params=pltpu.CompilerParams(
                # batch blocks independent (megacore); vocab axis reuses the
                # scratch-cached activation -> must stay serial ("arbitrary").
                dimension_semantics=("parallel", "arbitrary"),
                vmem_limit_bytes=vmem_limit),
        )(x, packed["w_qkv"], packed["b_qkv"], packed["w_o"], packed["b_o"],
          packed["w_lm"], packed["b_lm"])

    try:
        logits2d = run(True)
    except Exception:
        # Fallback for JAX builds that reject pl.Buffered(1) on pallas_call
        # BlockSpecs -- identical numerics, just default double buffering.
        logits2d = run(False)

    logits = logits2d.reshape(B, T, V_pad)
    if V_pad != V:
        # TODO(synk): a fused in-kernel cross-entropy (online logsumexp over
        # vocab tiles) would avoid both this pad-slice copy and the full
        # (B,T,V) logits writeback when targets are provided.
        logits = logits[:, :, :V]

    if targets is None:
        return logits, None
    logp = jax.nn.log_softmax(logits.reshape(B * T, V), axis=-1)
    loss = -jnp.mean(jnp.take_along_axis(logp, targets.reshape(B * T, 1), axis=1))
    return logits, loss


def init_params(key, vocab_size, hidden_size, block_size):
    ks = jax.random.split(key, 12)

    def lin(kw, kb, fan_in, fan_out):
        bound = 1.0 / math.sqrt(fan_in)
        w = jax.random.uniform(kw, (fan_in, fan_out), jnp.float32, -bound, bound)
        b = jax.random.uniform(kb, (1, fan_out), jnp.float32, -bound, bound)
        return w, b

    params = {}
    params["tok_emb"] = jax.random.normal(ks[0], (vocab_size, hidden_size), jnp.float32)
    params["pos_emb"] = jax.random.normal(ks[1], (block_size, hidden_size), jnp.float32)
    params["w_q"], params["b_q"] = lin(ks[2], ks[3], hidden_size, hidden_size)
    params["w_k"], params["b_k"] = lin(ks[4], ks[5], hidden_size, hidden_size)
    params["w_v"], params["b_v"] = lin(ks[6], ks[7], hidden_size, hidden_size)
    params["w_o"], params["b_o"] = lin(ks[8], ks[9], hidden_size, hidden_size)
    params["w_lm"], params["b_lm"] = lin(ks[10], ks[11], hidden_size, vocab_size)
    return params


def reference_forward(idx, params):
    """Pure-JAX f32 reference matching the PyTorch module."""
    T = idx.shape[1]
    H = params["tok_emb"].shape[1]
    x = jnp.take(params["tok_emb"], idx, axis=0) + params["pos_emb"][:T]
    q = x @ params["w_q"] + params["b_q"][0]
    k = x @ params["w_k"] + params["b_k"][0]
    v = x @ params["w_v"] + params["b_v"][0]
    attn = jnp.einsum("btd,bsd->bts", q, k) / math.sqrt(H)
    attn = jax.nn.softmax(attn, axis=-1)
    o = jnp.einsum("bts,bsd->btd", attn, v)
    out = o @ params["w_o"] + params["b_o"][0]
    return out @ params["w_lm"] + params["b_lm"][0]


if __name__ == "__main__":
    # vocab=300 -> padded to 384. Two configurations are exercised:
    #  (a) default b_blk=B (single W_lm pass, one vocab tile of 384)
    #  (b) b_blk=2, tile_v=128 (multi batch-block grid + 3 vocab tiles,
    #      exercising the pl.when scratch-cached activation path).
    vocab_size, hidden_size, block_size = 300, 32, 16
    B, T = 4, 8

    key = jax.random.PRNGKey(0)
    k_params, k_idx, k_tgt = jax.random.split(key, 3)
    params = init_params(k_params, vocab_size, hidden_size, block_size)
    packed = pack_params(params)
    idx = jax.random.randint(k_idx, (B, T), 0, vocab_size, dtype=jnp.int32)

    ref = reference_forward(idx, params)

    # (a) default config.
    logits_a, loss_a = language_model_forward(idx, packed)
    logits_a = jax.block_until_ready(logits_a)
    assert logits_a.shape == (B, T, vocab_size)
    assert loss_a is None
    # bf16 MXU operands + approx reciprocal -> loosened tolerance vs f32 ref.
    assert jnp.allclose(logits_a, ref, atol=5e-2, rtol=5e-2), (
        float(jnp.max(jnp.abs(logits_a - ref))))

    # (b) multi-block / multi-tile config.
    logits_b, _ = language_model_forward(idx, packed, b_blk=2, tile_v=128)
    logits_b = jax.block_until_ready(logits_b)
    assert jnp.allclose(logits_b, ref, atol=5e-2, rtol=5e-2), (
        float(jnp.max(jnp.abs(logits_b - ref))))

    # Loss path (plain-JAX cross entropy over the sliced logits).
    targets = jax.random.randint(k_tgt, (B, T), 0, vocab_size, dtype=jnp.int32)
    _, loss = language_model_forward(idx, packed, targets=targets)
    loss = jax.block_until_ready(loss)
    assert bool(jnp.isfinite(loss))

    print("KERNEL_OK")
</pallas_src>

<mosaic_0001>
module attributes {stable_mosaic.version = 11 : i64} {
  func.func @_lm_kernel(%arg0: i32, %arg1: i32, %arg2: memref<32x32xbf16, #tpu.memory_space<vmem>>, %arg3: memref<32x96xbf16, #tpu.memory_space<vmem>>, %arg4: memref<1x96xf32, #tpu.memory_space<vmem>>, %arg5: memref<32x32xbf16, #tpu.memory_space<vmem>>, %arg6: memref<1x32xf32, #tpu.memory_space<vmem>>, %arg7: memref<32x384xbf16, #tpu.memory_space<vmem>>, %arg8: memref<1x384xf32, #tpu.memory_space<vmem>>, %arg9: memref<32x384xf32, #tpu.memory_space<vmem>>, %arg10: memref<32x32xbf16, #tpu.memory_space<vmem>>) attributes {dimension_semantics = [#tpu.dimension_semantics<parallel>, #tpu.dimension_semantics<arbitrary>], iteration_bounds = array<i64: 1, 1>, scalar_prefetch = 0 : i64, scratch_operands = 1 : i64, tpu.core_type = #tpu.core_type<tc>, window_params = [{transform_indices = @transform_0, window_bounds = array<i64: 32, 32>}, {pipeline_mode = #tpu.pipeline_mode<synchronous>, transform_indices = @transform_1, window_bounds = array<i64: 32, 96>}, {pipeline_mode = #tpu.pipeline_mode<synchronous>, transform_indices = @transform_2, window_bounds = array<i64: 1, 96>}, {pipeline_mode = #tpu.pipeline_mode<synchronous>, transform_indices = @transform_3, window_bounds = array<i64: 32, 32>}, {pipeline_mode = #tpu.pipeline_mode<synchronous>, transform_indices = @transform_4, window_bounds = array<i64: 1, 32>}, {transform_indices = @transform_5, window_bounds = array<i64: 32, 384>}, {transform_indices = @transform_6, window_bounds = array<i64: 1, 384>}, {transform_indices = @transform_7, window_bounds = array<i64: 32, 384>}]} {
    %c0_i32 = arith.constant 0 : i32
    %0 = arith.cmpi eq, %arg1, %c0_i32 : i32
    %1 = arith.extui %0 : i1 to i32
    %c0_i32_0 = arith.constant 0 : i32
    %2 = arith.cmpi ne, %1, %c0_i32_0 : i32
    scf.if %2 {
      %c0_8 = arith.constant 0 : index
      %c0_9 = arith.constant 0 : index
      %12 = vector.load %arg2[%c0_8, %c0_9] : memref<32x32xbf16, #tpu.memory_space<vmem>>, vector<32x32xbf16>
      %c0_10 = arith.constant 0 : index
      %c0_11 = arith.constant 0 : index
      %13 = vector.load %arg3[%c0_10, %c0_11] : memref<32x96xbf16, #tpu.memory_space<vmem>>, vector<32x96xbf16>
      %cst_12 = arith.constant dense<0.000000e+00> : vector<32x96xf32>
      %14 = tpu.matmul %12, %13, %cst_12 {dimension_numbers = #tpu.dot_dimension_numbers<[1], [0], [0], [1], [0, 0, 1, 1], [], []>} : vector<32x32xbf16>, vector<32x96xbf16>, vector<32x96xf32> -> vector<32x96xf32>
      %c0_13 = arith.constant 0 : index
      %c0_14 = arith.constant 0 : index
      %15 = vector.load %arg4[%c0_13, %c0_14] : memref<1x96xf32, #tpu.memory_space<vmem>>, vector<1x96xf32>
      %16 = vector.shape_cast %15 : vector<1x96xf32> to vector<96xf32>
      %17 = vector.shape_cast %16 : vector<96xf32> to vector<1x96xf32>
      %18 = vector.broadcast %17 : vector<1x96xf32> to vector<32x96xf32>
      %19 = arith.addf %14, %18 : vector<32x96xf32>
      %20 = vector.extract_strided_slice %19 {offsets = [0, 0], sizes = [32, 32], strides = [1, 1]} : vector<32x96xf32> to vector<32x32xf32>
      %21 = arith.truncf %20 : vector<32x32xf32> to vector<32x32xbf16>
      %22 = vector.shape_cast %21 : vector<32x32xbf16> to vector<4x8x32xbf16>
      %23 = vector.extract_strided_slice %19 {offsets = [0, 32], sizes = [32, 32], strides = [1, 1]} : vector<32x96xf32> to vector<32x32xf32>
      %24 = arith.truncf %23 : vector<32x32xf32> to vector<32x32xbf16>
      %25 = vector.shape_cast %24 : vector<32x32xbf16> to vector<4x8x32xbf16>
      %26 = vector.extract_strided_slice %19 {offsets = [0, 64], sizes = [32, 32], strides = [1, 1]} : vector<32x96xf32> to vector<32x32xf32>
      %27 = arith.truncf %26 : vector<32x32xf32> to vector<32x32xbf16>
      %28 = vector.shape_cast %27 : vector<32x32xbf16> to vector<4x8x32xbf16>
      "tpu.trace_start"() <{level = 10 : i32, message = "bqd,bkd->bqk"}> : () -> ()
      %cst_15 = arith.constant dense<0.000000e+00> : vector<4x8x8xf32>
      %29 = tpu.matmul %22, %25, %cst_15 {dimension_numbers = #tpu.dot_dimension_numbers<[2], [2], [1], [1], [0, 0, 0, 1, 1, 1], [0], [0]>} : vector<4x8x32xbf16>, vector<4x8x32xbf16>, vector<4x8x8xf32> -> vector<4x8x8xf32>
      "tpu.trace_stop"() : () -> ()
      %cst_16 = arith.constant dense<0xFF800000> : vector<4x8xf32>
      %30 = vector.multi_reduction <maximumf>, %29, %cst_16 [2] : vector<4x8x8xf32> to vector<4x8xf32>
      %31 = vector.shape_cast %30 : vector<4x8xf32> to vector<4x8x1xf32>
      %32 = vector.broadcast %31 : vector<4x8x1xf32> to vector<4x8x8xf32>
      %33 = arith.subf %29, %32 : vector<4x8x8xf32>
      %34 = math.exp %33 : vector<4x8x8xf32>
      %cst_17 = arith.constant dense<0.000000e+00> : vector<4x8xf32>
      %35 = vector.multi_reduction <add>, %34, %cst_17 [2] : vector<4x8x8xf32> to vector<4x8xf32>
      %36 = vector.shape_cast %35 : vector<4x8xf32> to vector<4x8x1xf32>
      %37 = tpu.reciprocal %36 {approx = true} : vector<4x8x1xf32> -> vector<4x8x1xf32>
      %38 = vector.broadcast %37 : vector<4x8x1xf32> to vector<4x8x8xf32>
      %39 = arith.mulf %34, %38 : vector<4x8x8xf32>
      %40 = arith.truncf %39 : vector<4x8x8xf32> to vector<4x8x8xbf16>
      "tpu.trace_start"() <{level = 10 : i32, message = "bqk,bkd->bqd"}> : () -> ()
      %cst_18 = arith.constant dense<0.000000e+00> : vector<4x8x32xf32>
      %41 = tpu.matmul %40, %28, %cst_18 {dimension_numbers = #tpu.dot_dimension_numbers<[2], [1], [1], [2], [0, 0, 0, 1, 1, 2], [0], [0]>} : vector<4x8x8xbf16>, vector<4x8x32xbf16>, vector<4x8x32xf32> -> vector<4x8x32xf32>
      "tpu.trace_stop"() : () -> ()
      %42 = arith.truncf %41 : vector<4x8x32xf32> to vector<4x8x32xbf16>
      %43 = vector.shape_cast %42 : vector<4x8x32xbf16> to vector<32x32xbf16>
      %c0_19 = arith.constant 0 : index
      %c0_20 = arith.constant 0 : index
      %44 = vector.load %arg5[%c0_19, %c0_20] : memref<32x32xbf16, #tpu.memory_space<vmem>>, vector<32x32xbf16>
      %cst_21 = arith.constant dense<0.000000e+00> : vector<32x32xf32>
      %45 = tpu.matmul %43, %44, %cst_21 {dimension_numbers = #tpu.dot_dimension_numbers<[1], [0], [0], [1], [0, 0, 1, 1], [], []>} : vector<32x32xbf16>, vector<32x32xbf16>, vector<32x32xf32> -> vector<32x32xf32>
      %c0_22 = arith.constant 0 : index
      %c0_23 = arith.constant 0 : index
      %46 = vector.load %arg6[%c0_22, %c0_23] : memref<1x32xf32, #tpu.memory_space<vmem>>, vector<1x32xf32>
      %47 = vector.shape_cast %46 : vector<1x32xf32> to vector<32xf32>
      %48 = vector.shape_cast %47 : vector<32xf32> to vector<1x32xf32>
      %49 = vector.broadcast %48 : vector<1x32xf32> to vector<32x32xf32>
      %50 = arith.addf %45, %49 : vector<32x32xf32>
      %51 = arith.truncf %50 : vector<32x32xf32> to vector<32x32xbf16>
      %c0_24 = arith.constant 0 : index
      %c0_25 = arith.constant 0 : index
      %52 = vector.load %arg10[%c0_24, %c0_25] : memref<32x32xbf16, #tpu.memory_space<vmem>>, vector<32x32xbf16>
      tpu.vector_store %arg10[%c0_24, %c0_25], %51 {strides = array<i32>} : memref<32x32xbf16, #tpu.memory_space<vmem>>, vector<32x32xbf16>,
    } else {
    }
    %c0 = arith.constant 0 : index
    %c0_1 = arith.constant 0 : index
    %3 = vector.load %arg10[%c0, %c0_1] : memref<32x32xbf16, #tpu.memory_space<vmem>>, vector<32x32xbf16>
    %c0_2 = arith.constant 0 : index
    %c0_3 = arith.constant 0 : index
    %4 = vector.load %arg7[%c0_2, %c0_3] : memref<32x384xbf16, #tpu.memory_space<vmem>>, vector<32x384xbf16>
    %cst = arith.constant dense<0.000000e+00> : vector<32x384xf32>
    %5 = tpu.matmul %3, %4, %cst {dimension_numbers = #tpu.dot_dimension_numbers<[1], [0], [0], [1], [0, 0, 1, 1], [], []>} : vector<32x32xbf16>, vector<32x384xbf16>, vector<32x384xf32> -> vector<32x384xf32>
    %c0_4 = arith.constant 0 : index
    %c0_5 = arith.constant 0 : index
    %6 = vector.load %arg8[%c0_4, %c0_5] : memref<1x384xf32, #tpu.memory_space<vmem>>, vector<1x384xf32>
    %7 = vector.shape_cast %6 : vector<1x384xf32> to vector<384xf32>
    %8 = vector.shape_cast %7 : vector<384xf32> to vector<1x384xf32>
    %9 = vector.broadcast %8 : vector<1x384xf32> to vector<32x384xf32>
    %10 = arith.addf %5, %9 : vector<32x384xf32>
    %c0_6 = arith.constant 0 : index
    %c0_7 = arith.constant 0 : index
    %11 = vector.load %arg9[%c0_6, %c0_7] : memref<32x384xf32, #tpu.memory_space<vmem>>, vector<32x384xf32>
    tpu.vector_store %arg9[%c0_6, %c0_7], %10 {strides = array<i32>} : memref<32x384xf32, #tpu.memory_space<vmem>>, vector<32x384xf32>,
    return
  }
  func.func @transform_0(%arg0: i32, %arg1: i32) -> (i32, i32) {
    %c0_i32 = arith.constant 0 : i32
    %c0_i32_0 = arith.constant 0 : i32
    return %arg0, %c0_i32 : i32, i32
  }
  func.func @transform_1(%arg0: i32, %arg1: i32) -> (i32, i32) {
    %c0_i32 = arith.constant 0 : i32
    %c0_i32_0 = arith.constant 0 : i32
    %c0_i32_1 = arith.constant 0 : i32
    return %c0_i32, %c0_i32_0 : i32, i32
  }
  func.func @transform_2(%arg0: i32, %arg1: i32) -> (i32, i32) {
    %c0_i32 = arith.constant 0 : i32
    %c0_i32_0 = arith.constant 0 : i32
    %c0_i32_1 = arith.constant 0 : i32
    return %c0_i32, %c0_i32_0 : i32, i32
  }
  func.func @transform_3(%arg0: i32, %arg1: i32) -> (i32, i32) {
    %c0_i32 = arith.constant 0 : i32
    %c0_i32_0 = arith.constant 0 : i32
    %c0_i32_1 = arith.constant 0 : i32
    return %c0_i32, %c0_i32_0 : i32, i32
  }
  func.func @transform_4(%arg0: i32, %arg1: i32) -> (i32, i32) {
    %c0_i32 = arith.constant 0 : i32
    %c0_i32_0 = arith.constant 0 : i32
    %c0_i32_1 = arith.constant 0 : i32
    return %c0_i32, %c0_i32_0 : i32, i32
  }
  func.func @transform_5(%arg0: i32, %arg1: i32) -> (i32, i32) {
    %c0_i32 = arith.constant 0 : i32
    %c0_i32_0 = arith.constant 0 : i32
    return %c0_i32, %arg1 : i32, i32
  }
  func.func @transform_6(%arg0: i32, %arg1: i32) -> (i32, i32) {
    %c0_i32 = arith.constant 0 : i32
    %c0_i32_0 = arith.constant 0 : i32
    return %c0_i32, %arg1 : i32, i32
  }
  func.func @transform_7(%arg0: i32, %arg1: i32) -> (i32, i32) {
    %c0_i32 = arith.constant 0 : i32
    return %arg0, %arg1 : i32, i32
  }
}

module attributes {stable_mosaic.version = 11 : i64} {
  func.func @_lm_kernel(%arg0: i32, %arg1: i32, %arg2: memref<32x32xbf16, #tpu.memory_space<vmem>>, %arg3: memref<32x96xbf16, #tpu.memory_space<vmem>>, %arg4: memref<1x96xf32, #tpu.memory_space<vmem>>, %arg5: memref<32x32xbf16, #tpu.memory_space<vmem>>, %arg6: memref<1x32xf32, #tpu.memory_space<vmem>>, %arg7: memref<32x384xbf16, #tpu.memory_space<vmem>>, %arg8: memref<1x384xf32, #tpu.memory_space<vmem>>, %arg9: memref<32x384xf32, #tpu.memory_space<vmem>>, %arg10: memref<32x32xbf16, #tpu.memory_space<vmem>>) attributes {dimension_semantics = [#tpu.dimension_semantics<parallel>, #tpu.dimension_semantics<arbitrary>], iteration_bounds = array<i64: 1, 1>, scalar_prefetch = 0 : i64, scratch_operands = 1 : i64, tpu.core_type = #tpu.core_type<tc>, window_params = [{transform_indices = @transform_0, window_bounds = array<i64: 32, 32>}, {pipeline_mode = #tpu.pipeline_mode<synchronous>, transform_indices = @transform_1, window_bounds = array<i64: 32, 96>}, {pipeline_mode = #tpu.pipeline_mode<synchronous>, transform_indices = @transform_2, window_bounds = array<i64: 1, 96>}, {pipeline_mode = #tpu.pipeline_mode<synchronous>, transform_indices = @transform_3, window_bounds = array<i64: 32, 32>}, {pipeline_mode = #tpu.pipeline_mode<synchronous>, transform_indices = @transform_4, window_bounds = array<i64: 1, 32>}, {transform_indices = @transform_5, window_bounds = array<i64: 32, 384>}, {transform_indices = @transform_6, window_bounds = array<i64: 1, 384>}, {transform_indices = @transform_7, window_bounds = array<i64: 32, 384>}]} {
    %c0_i32 = arith.constant 0 : i32
    %0 = arith.cmpi eq, %arg1, %c0_i32 : i32
    %1 = arith.extui %0 : i1 to i32
    %c0_i32_0 = arith.constant 0 : i32
    %2 = arith.cmpi ne, %1, %c0_i32_0 : i32
    scf.if %2 {
      %c0_8 = arith.constant 0 : index
      %c0_9 = arith.constant 0 : index
      %12 = vector.load %arg2[%c0_8, %c0_9] : memref<32x32xbf16, #tpu.memory_space<vmem>>, vector<32x32xbf16>
      %c0_10 = arith.constant 0 : index
      %c0_11 = arith.constant 0 : index
      %13 = vector.load %arg3[%c0_10, %c0_11] : memref<32x96xbf16, #tpu.memory_space<vmem>>, vector<32x96xbf16>
      %cst_12 = arith.constant dense<0.000000e+00> : vector<32x96xf32>
      %14 = tpu.matmul %12, %13, %cst_12 {dimension_numbers = #tpu.dot_dimension_numbers<[1], [0], [0], [1], [0, 0, 1, 1], [], []>} : vector<32x32xbf16>, vector<32x96xbf16>, vector<32x96xf32> -> vector<32x96xf32>
      %c0_13 = arith.constant 0 : index
      %c0_14 = arith.constant 0 : index
      %15 = vector.load %arg4[%c0_13, %c0_14] : memref<1x96xf32, #tpu.memory_space<vmem>>, vector<1x96xf32>
      %16 = vector.shape_cast %15 : vector<1x96xf32> to vector<96xf32>
      %17 = vector.shape_cast %16 : vector<96xf32> to vector<1x96xf32>
      %18 = vector.broadcast %17 : vector<1x96xf32> to vector<32x96xf32>
      %19 = arith.addf %14, %18 : vector<32x96xf32>
      %20 = vector.extract_strided_slice %19 {offsets = [0, 0], sizes = [32, 32], strides = [1, 1]} : vector<32x96xf32> to vector<32x32xf32>
      %21 = arith.truncf %20 : vector<32x32xf32> to vector<32x32xbf16>
      %22 = vector.shape_cast %21 : vector<32x32xbf16> to vector<4x8x32xbf16>
      %23 = vector.extract_strided_slice %19 {offsets = [0, 32], sizes = [32, 32], strides = [1, 1]} : vector<32x96xf32> to vector<32x32xf32>
      %24 = arith.truncf %23 : vector<32x32xf32> to vector<32x32xbf16>
      %25 = vector.shape_cast %24 : vector<32x32xbf16> to vector<4x8x32xbf16>
      %26 = vector.extract_strided_slice %19 {offsets = [0, 64], sizes = [32, 32], strides = [1, 1]} : vector<32x96xf32> to vector<32x32xf32>
      %27 = arith.truncf %26 : vector<32x32xf32> to vector<32x32xbf16>
      %28 = vector.shape_cast %27 : vector<32x32xbf16> to vector<4x8x32xbf16>
      "tpu.trace_start"() <{level = 10 : i32, message = "bqd,bkd->bqk"}> : () -> ()
      %cst_15 = arith.constant dense<0.000000e+00> : vector<4x8x8xf32>
      %29 = tpu.matmul %22, %25, %cst_15 {dimension_numbers = #tpu.dot_dimension_numbers<[2], [2], [1], [1], [0, 0, 0, 1, 1, 1], [0], [0]>} : vector<4x8x32xbf16>, vector<4x8x32xbf16>, vector<4x8x8xf32> -> vector<4x8x8xf32>
      "tpu.trace_stop"() : () -> ()
      %cst_16 = arith.constant dense<0xFF800000> : vector<4x8xf32>
      %30 = vector.multi_reduction <maximumf>, %29, %cst_16 [2] : vector<4x8x8xf32> to vector<4x8xf32>
      %31 = vector.shape_cast %30 : vector<4x8xf32> to vector<4x8x1xf32>
      %32 = vector.broadcast %31 : vector<4x8x1xf32> to vector<4x8x8xf32>
      %33 = arith.subf %29, %32 : vector<4x8x8xf32>
      %34 = math.exp %33 : vector<4x8x8xf32>
      %cst_17 = arith.constant dense<0.000000e+00> : vector<4x8xf32>
      %35 = vector.multi_reduction <add>, %34, %cst_17 [2] : vector<4x8x8xf32> to vector<4x8xf32>
      %36 = vector.shape_cast %35 : vector<4x8xf32> to vector<4x8x1xf32>
      %37 = tpu.reciprocal %36 {approx = true} : vector<4x8x1xf32> -> vector<4x8x1xf32>
      %38 = vector.broadcast %37 : vector<4x8x1xf32> to vector<4x8x8xf32>
      %39 = arith.mulf %34, %38 : vector<4x8x8xf32>
      %40 = arith.truncf %39 : vector<4x8x8xf32> to vector<4x8x8xbf16>
      "tpu.trace_start"() <{level = 10 : i32, message = "bqk,bkd->bqd"}> : () -> ()
      %cst_18 = arith.constant dense<0.000000e+00> : vector<4x8x32xf32>
      %41 = tpu.matmul %40, %28, %cst_18 {dimension_numbers = #tpu.dot_dimension_numbers<[2], [1], [1], [2], [0, 0, 0, 1, 1, 2], [0], [0]>} : vector<4x8x8xbf16>, vector<4x8x32xbf16>, vector<4x8x32xf32> -> vector<4x8x32xf32>
      "tpu.trace_stop"() : () -> ()
      %42 = arith.truncf %41 : vector<4x8x32xf32> to vector<4x8x32xbf16>
      %43 = vector.shape_cast %42 : vector<4x8x32xbf16> to vector<32x32xbf16>
      %c0_19 = arith.constant 0 : index
      %c0_20 = arith.constant 0 : index
      %44 = vector.load %arg5[%c0_19, %c0_20] : memref<32x32xbf16, #tpu.memory_space<vmem>>, vector<32x32xbf16>
      %cst_21 = arith.constant dense<0.000000e+00> : vector<32x32xf32>
      %45 = tpu.matmul %43, %44, %cst_21 {dimension_numbers = #tpu.dot_dimension_numbers<[1], [0], [0], [1], [0, 0, 1, 1], [], []>} : vector<32x32xbf16>, vector<32x32xbf16>, vector<32x32xf32> -> vector<32x32xf32>
      %c0_22 = arith.constant 0 : index
      %c0_23 = arith.constant 0 : index
      %46 = vector.load %arg6[%c0_22, %c0_23] : memref<1x32xf32, #tpu.memory_space<vmem>>, vector<1x32xf32>
      %47 = vector.shape_cast %46 : vector<1x32xf32> to vector<32xf32>
      %48 = vector.shape_cast %47 : vector<32xf32> to vector<1x32xf32>
      %49 = vector.broadcast %48 : vector<1x32xf32> to vector<32x32xf32>
      %50 = arith.addf %45, %49 : vector<32x32xf32>
      %51 = arith.truncf %50 : vector<32x32xf32> to vector<32x32xbf16>
      %c0_24 = arith.constant 0 : index
      %c0_25 = arith.constant 0 : index
      %52 = vector.load %arg10[%c0_24, %c0_25] : memref<32x32xbf16, #tpu.memory_space<vmem>>, vector<32x32xbf16>
      tpu.vector_store %arg10[%c0_24, %c0_25], %51 {strides = array<i32>} : memref<32x32xbf16, #tpu.memory_space<vmem>>, vector<32x32xbf16>,
    } else {
    }
    %c0 = arith.constant 0 : index
    %c0_1 = arith.constant 0 : index
    %3 = vector.load %arg10[%c0, %c0_1] : memref<32x32xbf16, #tpu.memory_space<vmem>>, vector<32x32xbf16>
    %c0_2 = arith.constant 0 : index
    %c0_3 = arith.constant 0 : index
    %4 = vector.load %arg7[%c0_2, %c0_3] : memref<32x384xbf16, #tpu.memory_space<vmem>>, vector<32x384xbf16>
    %cst = arith.constant dense<0.000000e+00> : vector<32x384xf32>
    %5 = tpu.matmul %3, %4, %cst {dimension_numbers = #tpu.dot_dimension_numbers<[1], [0], [0], [1], [0, 0, 1, 1], [], []>} : vector<32x32xbf16>, vector<32x384xbf16>, vector<32x384xf32> -> vector<32x384xf32>
    %c0_4 = arith.constant 0 : index
    %c0_5 = arith.constant 0 : index
    %6 = vector.load %arg8[%c0_4, %c0_5] : memref<1x384xf32, #tpu.memory_space<vmem>>, vector<1x384xf32>
    %7 = vector.shape_cast %6 : vector<1x384xf32> to vector<384xf32>
    %8 = vector.shape_cast %7 : vector<384xf32> to vector<1x384xf32>
    %9 = vector.broadcast %8 : vector<1x384xf32> to vector<32x384xf32>
    %10 = arith.addf %5, %9 : vector<32x384xf32>
    %c0_6 = arith.constant 0 : index
    %c0_7 = arith.constant 0 : index
    %11 = vector.load %arg9[%c0_6, %c0_7] : memref<32x384xf32, #tpu.memory_space<vmem>>, vector<32x384xf32>
    tpu.vector_store %arg9[%c0_6, %c0_7], %10 {strides = array<i32>} : memref<32x384xf32, #tpu.memory_space<vmem>>, vector<32x384xf32>,
    return
  }
  func.func @transform_0(%arg0: i32, %arg1: i32) -> (i32, i32) {
    %c0_i32 = arith.constant 0 : i32
    %c0_i32_0 = arith.constant 0 : i32
    return %arg0, %c0_i32 : i32, i32
  }
  func.func @transform_1(%arg0: i32, %arg1: i32) -> (i32, i32) {
    %c0_i32 = arith.constant 0 : i32
    %c0_i32_0 = arith.constant 0 : i32
    %c0_i32_1 = arith.constant 0 : i32
    return %c0_i32, %c0_i32_0 : i32, i32
  }
  func.func @transform_2(%arg0: i32, %arg1: i32) -> (i32, i32) {
    %c0_i32 = arith.constant 0 : i32
    %c0_i32_0 = arith.constant 0 : i32
    %c0_i32_1 = arith.constant 0 : i32
    return %c0_i32, %c0_i32_0 : i32, i32
  }
  func.func @transform_3(%arg0: i32, %arg1: i32) -> (i32, i32) {
    %c0_i32 = arith.constant 0 : i32
    %c0_i32_0 = arith.constant 0 : i32
    %c0_i32_1 = arith.constant 0 : i32
    return %c0_i32, %c0_i32_0 : i32, i32
  }
  func.func @transform_4(%arg0: i32, %arg1: i32) -> (i32, i32) {
    %c0_i32 = arith.constant 0 : i32
    %c0_i32_0 = arith.constant 0 : i32
    %c0_i32_1 = arith.constant 0 : i32
    return %c0_i32, %c0_i32_0 : i32, i32
  }
  func.func @transform_5(%arg0: i32, %arg1: i32) -> (i32, i32) {
    %c0_i32 = arith.constant 0 : i32
    %c0_i32_0 = arith.constant 0 : i32
    return %c0_i32, %arg1 : i32, i32
  }
  func.func @transform_6(%arg0: i32, %arg1: i32) -> (i32, i32) {
    %c0_i32 = arith.constant 0 : i32
    %c0_i32_0 = arith.constant 0 : i32
    return %c0_i32, %arg1 : i32, i32
  }
  func.func @transform_7(%arg0: i32, %arg1: i32) -> (i32, i32) {
    %c0_i32 = arith.constant 0 : i32
    return %arg0, %arg1 : i32, i32
  }
}

</mosaic_0001>

<llo_original>
// kernel: tpu_custom_call.1
$region0: #{tpu_custom_call.1}
  #allocation0 [shape = 'u32[]', space=smem, size = 0x4, offset = 0x4, fixed_abs, tag = 'smem constant byte address 0x4 - core index']
  #allocation1 [shape = 'u32[144,128]{1,0:T(1,128)}', space=vmem, size = 0x12000, scoped, tag = 'internal scratch']
  #allocation2 [shape = 'bf16[32,32]{1,0:T(16,128)(2,1)}', space=vmem, size = 0x2000, scoped, tag = 'scratch operand']
  %s0 = inlined_call_operand.hbm [shape: bf16[32,32], index: 0, kind: input, shape index: {}]
  %s1 = inlined_call_operand.hbm [shape: bf16[32,96], index: 1, kind: input, shape index: {}]
  %s2 = inlined_call_operand.vmem [shape: f32[1,96], index: 2, kind: input, shape index: {}]
  %s3 = inlined_call_operand.hbm [shape: bf16[32,32], index: 3, kind: input, shape index: {}]
  %s4 = inlined_call_operand.vmem [shape: f32[1,32], index: 4, kind: input, shape index: {}]
  %s5 = inlined_call_operand.hbm [shape: bf16[32,384], index: 5, kind: input, shape index: {}]
  %s6 = inlined_call_operand.vmem [shape: f32[1,384], index: 6, kind: input, shape index: {}]
  %s7 = inlined_call_operand.hbm [shape: f32[32,384], index: 7, kind: output, shape index: {}]
  %s8 = sld [smem:[#allocation0]]
  $region58: #{tpu_custom_call.1} parent=0
    _
  %s10 = ssub.s32 1, %s8
  %s11 = scalar_select 0, %s10, %s8
  $region1: #{tpu_custom_call.1} parent=0
    #allocation3 [shape = 'u8[8192]{0}', space=vmem, size = 0x2000, scoped, tag = 'input window, operand 0, single buffered']
    #allocation4 [shape = 's32[1]{0}', space=sflag, size = 0x4, scoped, tag = 'scoped memory for tpu_custom_call.1']
    #allocation5 [shape = 's32[1]{0}', space=sflag, size = 0x4, scoped, tag = 'scoped memory for tpu_custom_call.1']
    #allocation6 [shape = 'u8[8192]{0}', space=vmem, size = 0x2000, scoped, tag = 'input window, operand 1, single buffered']
    #allocation7 [shape = 's32[1]{0}', space=sflag, size = 0x4, scoped, tag = 'scoped memory for tpu_custom_call.1']
    #allocation8 [shape = 'u8[8192]{0}', space=vmem, size = 0x2000, scoped, tag = 'input window, operand 3, single buffered']
    #allocation9 [shape = 'u8[24576]{0}', space=vmem, size = 0x6000, scoped, tag = 'input window, operand 5, single buffered']
    #allocation10 [shape = 's32[1]{0}', space=sflag, size = 0x4, scoped, tag = 'scoped memory for tpu_custom_call.1']
    #allocation11 [shape = 'u8[49152]{0}', space=vmem, size = 0xc000, scoped, tag = 'output window, operand 0, single buffered']
    %12 = vsyncpa [#allocation4], 0
    %13 = vsyncpa [#allocation7], 0
    %14 = vsyncpa [#allocation10], 0
    %15 = vsyncpa [#allocation5], 0
    // Predicated region
    $region2: #{tpu_custom_call.1} parent=1 // pred_check
      _
    $region3: #{tpu_custom_call.1} parent=1 // pred_check_branch
      %17 = sbr.rel (0) target = $region5
    $region4: #{tpu_custom_call.1} parent=1 // pred_region
      %s19 = ssub.s32 256, 256
      %20 = vsyncadd [#allocation4], %s19
      %s21 = sshll.u32 [#allocation3], 4
      %s22 = int_to_ptr.vmem [resolvable:$true] %s21
      %27 = dma.hbm_to_vmem [thread:$0]  %s0, 256, %s22, [#allocation4], 64, 64, 4
    $region5: #{tpu_custom_call.1} parent=1 // pred_fallthru
      _
    // Predicated region
    $region6: #{tpu_custom_call.1} parent=1 // pred_check
      _
    $region7: #{tpu_custom_call.1} parent=1 // pred_check_branch
      %29 = sbr.rel (0) target = $region9
    $region8: #{tpu_custom_call.1} parent=1 // pred_region
      %s31 = ssub.s32 256, 256
      %32 = vsyncadd [#allocation7], %s31
      %s33 = sshll.u32 [#allocation6], 4
      %s34 = int_to_ptr.vmem [resolvable:$true] %s33
      %39 = dma.hbm_to_vmem [thread:$0]  %s1, 256, %s34, [#allocation7], 64, 64, 4
    $region9: #{tpu_custom_call.1} parent=1 // pred_fallthru
      _
    // Predicated region
    $region10: #{tpu_custom_call.1} parent=1 // pred_check
      _
    $region11: #{tpu_custom_call.1} parent=1 // pred_check_branch
      %41 = sbr.rel (0) target = $region13
    $region12: #{tpu_custom_call.1} parent=1 // pred_region
      _
    $region13: #{tpu_custom_call.1} parent=1 // pred_fallthru
      _
    // Predicated region
    $region14: #{tpu_custom_call.1} parent=1 // pred_check
      _
    $region15: #{tpu_custom_call.1} parent=1 // pred_check_branch
      %43 = sbr.rel (0) target = $region17
    $region16: #{tpu_custom_call.1} parent=1 // pred_region
      %s45 = ssub.s32 256, 256
      %46 = vsyncadd [#allocation7], %s45
      %s47 = sshll.u32 [#allocation8], 4
      %s48 = int_to_ptr.vmem [resolvable:$true] %s47
      %53 = dma.hbm_to_vmem [thread:$0]  %s3, 256, %s48, [#allocation7], 64, 64, 4
    $region17: #{tpu_custom_call.1} parent=1 // pred_fallthru
      _
    // Predicated region
    $region18: #{tpu_custom_call.1} parent=1 // pred_check
      _
    $region19: #{tpu_custom_call.1} parent=1 // pred_check_branch
      %55 = sbr.rel (0) target = $region21
    $region20: #{tpu_custom_call.1} parent=1 // pred_region
      _
    $region21: #{tpu_custom_call.1} parent=1 // pred_fallthru
      _
    // Predicated region
    $region22: #{tpu_custom_call.1} parent=1 // pred_check
      _
    $region23: #{tpu_custom_call.1} parent=1 // pred_check_branch
      %57 = sbr.rel (0) target = $region25
    $region24: #{tpu_custom_call.1} parent=1 // pred_region
      %s59 = ssub.s32 768, 768
      %60 = vsyncadd [#allocation10], %s59
      %s61 = sshll.u32 [#allocation9], 4
      %s62 = int_to_ptr.vmem [resolvable:$true] %s61
      %67 = dma.hbm_to_vmem [thread:$0]  %s5, 768, %s62, [#allocation10], 192, 192, 12
    $region25: #{tpu_custom_call.1} parent=1 // pred_fallthru
      _
    // Predicated region
    $region26: #{tpu_custom_call.1} parent=1 // pred_check
      _
    $region27: #{tpu_custom_call.1} parent=1 // pred_check_branch
      %69 = sbr.rel (0) target = $region29
    $region28: #{tpu_custom_call.1} parent=1 // pred_region
      _
    $region29: #{tpu_custom_call.1} parent=1 // pred_fallthru
      _
    // Predicated region
    $region30: #{tpu_custom_call.1} parent=1 // pred_check
      _
    $region31: #{tpu_custom_call.1} parent=1 // pred_check_branch
      %71 = sbr.rel (0) target = $region33
    $region32: #{tpu_custom_call.1} parent=1 // pred_region
      %72 = dma.done [#allocation4], 256
    $region33: #{tpu_custom_call.1} parent=1 // pred_fallthru
      _
    // Predicated region
    $region34: #{tpu_custom_call.1} parent=1 // pred_check
      _
    $region35: #{tpu_custom_call.1} parent=1 // pred_check_branch
      %74 = sbr.rel (0) target = $region37
    $region36: #{tpu_custom_call.1} parent=1 // pred_region
      %75 = dma.done [#allocation7], 256
    $region37: #{tpu_custom_call.1} parent=1 // pred_fallthru
      _
    // Predicated region
    $region38: #{tpu_custom_call.1} parent=1 // pred_check
      _
    $region39: #{tpu_custom_call.1} parent=1 // pred_check_branch
      %77 = sbr.rel (0) target = $region41
    $region40: #{tpu_custom_call.1} parent=1 // pred_region
      %78 = dma.done [#allocation7], 256
    $region41: #{tpu_custom_call.1} parent=1 // pred_fallthru
      _
    // Predicated region
    $region42: #{tpu_custom_call.1} parent=1 // pred_check
      _
    $region43: #{tpu_custom_call.1} parent=1 // pred_check_branch
      %80 = sbr.rel (0) target = $region45
    $region44: #{tpu_custom_call.1} parent=1 // pred_region
      %81 = dma.done [#allocation10], 768
    $region45: #{tpu_custom_call.1} parent=1 // pred_fallthru
      _
    %p83 = scmp.eq.s32.totalorder 0, 0
    // Predicated region
    $region46: #{tpu_custom_call.1} parent=1 // pred_check
      %p84 = pneg %p83
    $region47: #{tpu_custom_call.1} parent=1 // pred_check_branch
      %86 = sbr.rel (%p84) target = $region49
    $region48: #{tpu_custom_call.1} parent=1 // pred_region
      %v87 = vld [vmem:[#allocation3] sm:$0xf]
      %v88 = vld [vmem:[#allocation3 + $0x4] sm:$0xf]
      %v89 = vld [vmem:[#allocation3 + $0x8] sm:$0xf]
      %v90 = vld [vmem:[#allocation3 + $0xc] sm:$0xf]
      %v91 = vld [vmem:[#allocation6] sm:$0xf]
      %v92 = vld [vmem:[#allocation6 + $0x4] sm:$0xf]
      %v93 = vld [vmem:[#allocation6 + $0x8] sm:$0xf]
      %v94 = vld [vmem:[#allocation6 + $0xc] sm:$0xf]
      %v95 = vld [vmem:[%s2] sm:$0x1]
      %v97 = vlaneseq
      %v98 = vshrl.u32 %v97, 7
      %v99 = vsub.s32 0, %v98
      %v100 = vrot.slane %v95, %v99
      %v106 = vunpack.c.l.b16 %v87
      %v107 = vunpack.c.l.b16 %v88
      %v108 = vunpack.c.l.b16 %v89
      %v109 = vunpack.c.l.b16 %v90
      %v110 = vpack.c.b16 %v107, %v106
      %v111 = vpack.c.b16 %v109, %v108
      %v116 = vunpack.c.l.b16 %v91
      %v117 = vunpack.c.l.b16 %v92
      %v118 = vunpack.c.l.b16 %v93
      %v119 = vunpack.c.l.b16 %v94
      %v120 = vpack.c.b16 %v117, %v116
      %v121 = vpack.c.b16 %v119, %v118
      %vm124 = vcmask 261120
      %v126 = vsel %vm124, %v110, 0
      %v129 = vsel %vm124, %v111, 0
      %131 = vmatprep.subr.bf16.mxu0 0
      %132 = vmatpush1.bf16.msra.mxu0 %v120
      %133 = vmatprep.subr.bf16.mxu0 0
      %134 = vmatpush1.bf16.msra.mxu0 %v121
      %135 = vmatprep.subr.bf16.mxu0 0
      %136 = vmatpush1.bf16.msra.mxu0 0
      %137 = vmatprep.subr.bf16.mxu0 0
      %138 = vmatpush1.bf16.msra.mxu0 0
      %139 = vmatprep.subr.bf16.mxu0 0
      %140 = vmatpush1.bf16.msra.mxu0 0
      %141 = vmatprep.subr.bf16.mxu0 0
      %142 = vmatpush1.bf16.msra.mxu0 0
      %143 = vmatprep.subr.bf16.mxu0 0
      %144 = vmatpush1.bf16.msra.mxu0 0
      %145 = vmatprep.subr.bf16.mxu0 0
      %146 = vmatpush1.bf16.msra.mxu0 0
      %147 = vmatprep.subr.bf16.mxu0 0
      %148 = vmatpush1.bf16.msra.mxu0 0
      %149 = vmatprep.subr.bf16.mxu0 0
      %150 = vmatpush1.bf16.msra.mxu0 0
      %151 = vmatprep.subr.bf16.mxu0 0
      %152 = vmatpush1.bf16.msra.mxu0 0
      %153 = vmatprep.subr.bf16.mxu0 0
      %154 = vmatpush1.bf16.msra.mxu0 0
      %155 = vmatprep.subr.bf16.mxu0 0
      %156 = vmatpush1.bf16.msra.mxu0 0
      %157 = vmatprep.subr.bf16.mxu0 0
      %158 = vmatpush1.bf16.msra.mxu0 0
      %159 = vmatprep.subr.bf16.mxu0 0
      %160 = vmatpush1.bf16.msra.mxu0 0
      %161 = vmatprep.subr.bf16.mxu0 0
      %162 = vmatpush1.bf16.msra.mxu0 0
      %163 = vmatprep.mubr.bf16.mxu0 0
      %164 = vmatmul.mubr.bf16.gmra.mrb[0].mxu0 %v126
      %v165 = vpop.f32.mrb[0].mxu0
      %v166 = vadd.f32 %v100, %v165
      %v167 = vpop.f32.mrb[0].mxu0
      %v168 = vpop.f32.mrb[0].mxu0
      %v169 = vadd.f32 %v100, %v168
      %v170 = vpop.f32.mrb[0].mxu0
      %171 = vmatprep.mubr.bf16.mxu0 0
      %172 = vmatmul.mubr.bf16.gmra.mrb[0].mxu0 %v129
      %v173 = vpop.f32.mrb[0].mxu0
      %v174 = vadd.f32 %v100, %v173
      %v175 = vpop.f32.mrb[0].mxu0
      %v176 = vpop.f32.mrb[0].mxu0
      %v177 = vadd.f32 %v100, %v176
      %v178 = vpop.f32.mrb[0].mxu0
      %179 = vdwg.mxu0
      %v180 = vpack.c.bf16 %v169, %v166
      %v181 = vpack.c.bf16 %v177, %v174
      %v184 = vunpack.c.l.b16 %v180
      %v185 = vunpack.c.h.b16 %v180
      %v186 = vunpack.c.l.b16 %v181
      %v187 = vunpack.c.h.b16 %v181
      %v188 = vpack.c.b16 %v184, %v184
      %v189 = vpack.c.b16 %v185, %v185
      %v190 = vpack.c.b16 %v186, %v186
      %v191 = vpack.c.b16 %v187, %v187
      %192 = vrot.lane.b32.xlu0 %v188, 96
      %v193 = vpop.permute.xlu0 %192
      %v195 = vsel %vm124, %v188, 0
      %v198 = vsel %vm124, %v193, 0
      %200 = vmatprep.subr.bf16.mxu0 0
      %201 = vmatpush1.bf16.xpose.msra.mxu0 %v198
      %202 = vmatprep.subr.bf16.mxu0 0
      %203 = vmatpush1.bf16.xpose.msra.mxu0 0
      %204 = vmatprep.subr.bf16.mxu0 0
      %205 = vmatpush1.bf16.xpose.msra.mxu0 0
      %206 = vmatprep.subr.bf16.mxu0 0
      %207 = vmatpush1.bf16.xpose.msra.mxu0 0
      %208 = vmatprep.subr.bf16.mxu0 0
      %209 = vmatpush1.bf16.xpose.msra.mxu0 0
      %210 = vmatprep.subr.bf16.mxu0 0
      %211 = vmatpush1.bf16.xpose.msra.mxu0 0
      %212 = vmatprep.subr.bf16.mxu0 0
      %213 = vmatpush1.bf16.xpose.msra.mxu0 0
      %214 = vmatprep.subr.bf16.mxu0 0
      %215 = vmatpush1.bf16.xpose.msra.mxu0 0
      %216 = vmatprep.subr.bf16.mxu0 0
      %217 = vmatpush1.bf16.xpose.msra.mxu0 0
      %218 = vmatprep.subr.bf16.mxu0 0
      %219 = vmatpush1.bf16.xpose.msra.mxu0 0
      %220 = vmatprep.subr.bf16.mxu0 0
      %221 = vmatpush1.bf16.xpose.msra.mxu0 0
      %222 = vmatprep.subr.bf16.mxu0 0
      %223 = vmatpush1.bf16.xpose.msra.mxu0 0
      %224 = vmatprep.subr.bf16.mxu0 0
      %225 = vmatpush1.bf16.xpose.msra.mxu0 0
      %226 = vmatprep.subr.bf16.mxu0 0
      %227 = vmatpush1.bf16.xpose.msra.mxu0 0
      %228 = vmatprep.subr.bf16.mxu0 0
      %229 = vmatpush1.bf16.xpose.msra.mxu0 0
      %230 = vmatprep.subr.bf16.mxu0 0
      %231 = vmatpush1.bf16.xpose.msra.mxu0 0
      %232 = vmatprep.mubr.bf16.mxu0 0
      %233 = vmatmul.mubr.bf16.gmra.mrb[0].mxu0 %v195
      %v234 = vpop.f32.mrb[0].mxu0
      %v235 = vadd.f32 0.0, %v234
      %v236 = vpop.f32.mrb[0].mxu0
      %v237 = vpop.f32.mrb[0].mxu0
      %v238 = vpop.f32.mrb[0].mxu0
      %239 = vdwg.mxu0
      %240 = vrot.lane.b32.xlu0 %v189, 96
      %v241 = vpop.permute.xlu0 %240
      %v243 = vsel %vm124, %v189, 0
      %v246 = vsel %vm124, %v241, 0
      %248 = vmatprep.subr.bf16.mxu0 0
      %249 = vmatpush1.bf16.xpose.msra.mxu0 %v246
      %250 = vmatprep.subr.bf16.mxu0 0
      %251 = vmatpush1.bf16.xpose.msra.mxu0 0
      %252 = vmatprep.subr.bf16.mxu0 0
      %253 = vmatpush1.bf16.xpose.msra.mxu0 0
      %254 = vmatprep.subr.bf16.mxu0 0
      %255 = vmatpush1.bf16.xpose.msra.mxu0 0
      %256 = vmatprep.subr.bf16.mxu0 0
      %257 = vmatpush1.bf16.xpose.msra.mxu0 0
      %258 = vmatprep.subr.bf16.mxu0 0
      %259 = vmatpush1.bf16.xpose.msra.mxu0 0
      %260 = vmatprep.subr.bf16.mxu0 0
      %261 = vmatpush1.bf16.xpose.msra.mxu0 0
      %262 = vmatprep.subr.bf16.mxu0 0
      %263 = vmatpush1.bf16.xpose.msra.mxu0 0
      %264 = vmatprep.subr.bf16.mxu0 0
      %265 = vmatpush1.bf16.xpose.msra.mxu0 0
      %266 = vmatprep.subr.bf16.mxu0 0
      %267 = vmatpush1.bf16.xpose.msra.mxu0 0
      %268 = vmatprep.subr.bf16.mxu0 0
      %269 = vmatpush1.bf16.xpose.msra.mxu0 0
      %270 = vmatprep.subr.bf16.mxu0 0
      %271 = vmatpush1.bf16.xpose.msra.mxu0 0
      %272 = vmatprep.subr.bf16.mxu0 0
      %273 = vmatpush1.bf16.xpose.msra.mxu0 0
      %274 = vmatprep.subr.bf16.mxu0 0
      %275 = vmatpush1.bf16.xpose.msra.mxu0 0
      %276 = vmatprep.subr.bf16.mxu0 0
      %277 = vmatpush1.bf16.xpose.msra.mxu0 0
      %278 = vmatprep.subr.bf16.mxu0 0
      %279 = vmatpush1.bf16.xpose.msra.mxu0 0
      %280 = vmatprep.mubr.bf16.mxu0 0
      %281 = vmatmul.mubr.bf16.gmra.mrb[0].mxu0 %v243
      %v282 = vpop.f32.mrb[0].mxu0
      %v283 = vadd.f32 0.0, %v282
      %v284 = vpop.f32.mrb[0].mxu0
      %v285 = vpop.f32.mrb[0].mxu0
      %v286 = vpop.f32.mrb[0].mxu0
      %287 = vdwg.mxu0
      %288 = vrot.lane.b32.xlu0 %v190, 96
      %v289 = vpop.permute.xlu0 %288
      %v291 = vsel %vm124, %v190, 0
      %v294 = vsel %vm124, %v289, 0
      %296 = vmatprep.subr.bf16.mxu0 0
      %297 = vmatpush1.bf16.xpose.msra.mxu0 %v294
      %298 = vmatprep.subr.bf16.mxu0 0
      %299 = vmatpush1.bf16.xpose.msra.mxu0 0
      %300 = vmatprep.subr.bf16.mxu0 0
      %301 = vmatpush1.bf16.xpose.msra.mxu0 0
      %302 = vmatprep.subr.bf16.mxu0 0
      %303 = vmatpush1.bf16.xpose.msra.mxu0 0
      %304 = vmatprep.subr.bf16.mxu0 0
      %305 = vmatpush1.bf16.xpose.msra.mxu0 0
      %306 = vmatprep.subr.bf16.mxu0 0
      %307 = vmatpush1.bf16.xpose.msra.mxu0 0
      %308 = vmatprep.subr.bf16.mxu0 0
      %309 = vmatpush1.bf16.xpose.msra.mxu0 0
      %310 = vmatprep.subr.bf16.mxu0 0
      %311 = vmatpush1.bf16.xpose.msra.mxu0 0
      %312 = vmatprep.subr.bf16.mxu0 0
      %313 = vmatpush1.bf16.xpose.msra.mxu0 0
      %314 = vmatprep.subr.bf16.mxu0 0
      %315 = vmatpush1.bf16.xpose.msra.mxu0 0
      %316 = vmatprep.subr.bf16.mxu0 0
      %317 = vmatpush1.bf16.xpose.msra.mxu0 0
      %318 = vmatprep.subr.bf16.mxu0 0
      %319 = vmatpush1.bf16.xpose.msra.mxu0 0
      %320 = vmatprep.subr.bf16.mxu0 0
      %321 = vmatpush1.bf16.xpose.msra.mxu0 0
      %322 = vmatprep.subr.bf16.mxu0 0
      %323 = vmatpush1.bf16.xpose.msra.mxu0 0
      %324 = vmatprep.subr.bf16.mxu0 0
      %325 = vmatpush1.bf16.xpose.msra.mxu0 0
      %326 = vmatprep.subr.bf16.mxu0 0
      %327 = vmatpush1.bf16.xpose.msra.mxu0 0
      %328 = vmatprep.mubr.bf16.mxu0 0
      %329 = vmatmul.mubr.bf16.gmra.mrb[0].mxu0 %v291
      %v330 = vpop.f32.mrb[0].mxu0
      %v331 = vadd.f32 0.0, %v330
      %v332 = vpop.f32.mrb[0].mxu0
      %v333 = vpop.f32.mrb[0].mxu0
      %v334 = vpop.f32.mrb[0].mxu0
      %335 = vdwg.mxu0
      %336 = vrot.lane.b32.xlu0 %v191, 96
      %v337 = vpop.permute.xlu0 %336
      %v339 = vsel %vm124, %v191, 0
      %v342 = vsel %vm124, %v337, 0
      %344 = vmatprep.subr.bf16.mxu0 0
      %345 = vmatpush1.bf16.xpose.msra.mxu0 %v342
      %346 = vmatprep.subr.bf16.mxu0 0
      %347 = vmatpush1.bf16.xpose.msra.mxu0 0
      %348 = vmatprep.subr.bf16.mxu0 0
      %349 = vmatpush1.bf16.xpose.msra.mxu0 0
      %350 = vmatprep.subr.bf16.mxu0 0
      %351 = vmatpush1.bf16.xpose.msra.mxu0 0
      %352 = vmatprep.subr.bf16.mxu0 0
      %353 = vmatpush1.bf16.xpose.msra.mxu0 0
      %354 = vmatprep.subr.bf16.mxu0 0
      %355 = vmatpush1.bf16.xpose.msra.mxu0 0
      %356 = vmatprep.subr.bf16.mxu0 0
      %357 = vmatpush1.bf16.xpose.msra.mxu0 0
      %358 = vmatprep.subr.bf16.mxu0 0
      %359 = vmatpush1.bf16.xpose.msra.mxu0 0
      %360 = vmatprep.subr.bf16.mxu0 0
      %361 = vmatpush1.bf16.xpose.msra.mxu0 0
      %362 = vmatprep.subr.bf16.mxu0 0
      %363 = vmatpush1.bf16.xpose.msra.mxu0 0
      %364 = vmatprep.subr.bf16.mxu0 0
      %365 = vmatpush1.bf16.xpose.msra.mxu0 0
      %366 = vmatprep.subr.bf16.mxu0 0
      %367 = vmatpush1.bf16.xpose.msra.mxu0 0
      %368 = vmatprep.subr.bf16.mxu0 0
      %369 = vmatpush1.bf16.xpose.msra.mxu0 0
      %370 = vmatprep.subr.bf16.mxu0 0
      %371 = vmatpush1.bf16.xpose.msra.mxu0 0
      %372 = vmatprep.subr.bf16.mxu0 0
      %373 = vmatpush1.bf16.xpose.msra.mxu0 0
      %374 = vmatprep.subr.bf16.mxu0 0
      %375 = vmatpush1.bf16.xpose.msra.mxu0 0
      %376 = vmatprep.mubr.bf16.mxu0 0
      %377 = vmatmul.mubr.bf16.gmra.mrb[0].mxu0 %v339
      %v378 = vpop.f32.mrb[0].mxu0
      %v379 = vadd.f32 0.0, %v378
      %v380 = vpop.f32.mrb[0].mxu0
      %v381 = vpop.f32.mrb[0].mxu0
      %v382 = vpop.f32.mrb[0].mxu0
      %383 = vdwg.mxu0
      %vm384 = vcmask 64512
      %v385 = vsel %vm384, %v235, -inf
      %386 = vmax.xlane.f32.xlu0 %v385
      %v387 = vpop.xlane.xlu0 %386
      %v388 = vsel %vm384, %v283, -inf
      %389 = vmax.xlane.f32.xlu0 %v388
      %v390 = vpop.xlane.xlu0 %389
      %v391 = vsel %vm384, %v331, -inf
      %392 = vmax.xlane.f32.xlu0 %v391
      %v393 = vpop.xlane.xlu0 %392
      %v394 = vsel %vm384, %v379, -inf
      %395 = vmax.xlane.f32.xlu0 %v394
      %v396 = vpop.xlane.xlu0 %395
      %v397 = vsub.f32 %v235, %v387
      %v398 = vsub.f32 %v283, %v390
      %v399 = vsub.f32 %v331, %v393
      %v400 = vsub.f32 %v379, %v396
      %v401 = vmul.f32 %v397, 1.442695
      %v402 = vpow.pop %v401
      %v403 = vmul.f32 %v398, 1.442695
      %v404 = vpow.pop %v403
      %v405 = vmul.f32 %v399, 1.442695
      %v406 = vpow.pop %v405
      %v407 = vmul.f32 %v400, 1.442695
      %v408 = vpow.pop %v407
      %v409 = vsel %vm384, %v402, 0.0
      %410 = vadd.xlane.f32.xlu0 %v409
      %v411 = vpop.xlane.xlu0 %410
      %v412 = vsel %vm384, %v404, 0.0
      %413 = vadd.xlane.f32.xlu0 %v412
      %v414 = vpop.xlane.xlu0 %413
      %v415 = vsel %vm384, %v406, 0.0
      %416 = vadd.xlane.f32.xlu0 %v415
      %v417 = vpop.xlane.xlu0 %416
      %v418 = vsel %vm384, %v408, 0.0
      %419 = vadd.xlane.f32.xlu0 %v418
      %v420 = vpop.xlane.xlu0 %419
      %v421 = vrcp.pop %v411
      %v422 = vrcp.pop %v414
      %v423 = vrcp.pop %v417
      %v424 = vrcp.pop %v420
      %v425 = vmul.f32 %v402, %v421
      %v426 = vmul.f32 %v404, %v422
      %v427 = vmul.f32 %v406, %v423
      %v428 = vmul.f32 %v408, %v424
      %v429 = vpack.c.bf16 %v425, %v425
      %v430 = vpack.c.bf16 %v426, %v426
      %v431 = vpack.c.bf16 %v427, %v427
      %v432 = vpack.c.bf16 %v428, %v428
      %433 = vrot.lane.b32.xlu0 %v188, 64
      %v434 = vpop.permute.xlu0 %433
      %v436 = vsel %vm384, %v429, 0
      %vm438 = vcmask 1043456
      %v440 = vsel %vm438, %v434, 0
      %442 = vmatprep.subr.bf16.mxu0 0
      %443 = vmatpush1.bf16.msra.mxu0 %v440
      %444 = vmatprep.subr.bf16.mxu0 0
      %445 = vmatpush1.bf16.msra.mxu0 0
      %446 = vmatprep.subr.bf16.mxu0 0
      %447 = vmatpush1.bf16.msra.mxu0 0
      %448 = vmatprep.subr.bf16.mxu0 0
      %449 = vmatpush1.bf16.msra.mxu0 0
      %450 = vmatprep.subr.bf16.mxu0 0
      %451 = vmatpush1.bf16.msra.mxu0 0
      %452 = vmatprep.subr.bf16.mxu0 0
      %453 = vmatpush1.bf16.msra.mxu0 0
      %454 = vmatprep.subr.bf16.mxu0 0
      %455 = vmatpush1.bf16.msra.mxu0 0
      %456 = vmatprep.subr.bf16.mxu0 0
      %457 = vmatpush1.bf16.msra.mxu0 0
      %458 = vmatprep.subr.bf16.mxu0 0
      %459 = vmatpush1.bf16.msra.mxu0 0
      %460 = vmatprep.subr.bf16.mxu0 0
      %461 = vmatpush1.bf16.msra.mxu0 0
      %462 = vmatprep.subr.bf16.mxu0 0
      %463 = vmatpush1.bf16.msra.mxu0 0
      %464 = vmatprep.subr.bf16.mxu0 0
      %465 = vmatpush1.bf16.msra.mxu0 0
      %466 = vmatprep.subr.bf16.mxu0 0
      %467 = vmatpush1.bf16.msra.mxu0 0
      %468 = vmatprep.subr.bf16.mxu0 0
      %469 = vmatpush1.bf16.msra.mxu0 0
      %470 = vmatprep.subr.bf16.mxu0 0
      %471 = vmatpush1.bf16.msra.mxu0 0
      %472 = vmatprep.subr.bf16.mxu0 0
      %473 = vmatpush1.bf16.msra.mxu0 0
      %474 = vmatprep.mubr.bf16.mxu0 0
      %475 = vmatmul.mubr.bf16.gmra.mrb[0].mxu0 %v436
      %v476 = vpop.f32.mrb[0].mxu0
      %v477 = vadd.f32 0.0, %v476
      %v478 = vpop.f32.mrb[0].mxu0
      %v479 = vpop.f32.mrb[0].mxu0
      %v480 = vpop.f32.mrb[0].mxu0
      %481 = vdwg.mxu0
      %482 = vrot.lane.b32.xlu0 %v189, 64
      %v483 = vpop.permute.xlu0 %482
      %v485 = vsel %vm384, %v430, 0
      %v488 = vsel %vm438, %v483, 0
      %490 = vmatprep.subr.bf16.mxu0 0
      %491 = vmatpush1.bf16.msra.mxu0 %v488
      %492 = vmatprep.subr.bf16.mxu0 0
      %493 = vmatpush1.bf16.msra.mxu0 0
      %494 = vmatprep.subr.bf16.mxu0 0
      %495 = vmatpush1.bf16.msra.mxu0 0
      %496 = vmatprep.subr.bf16.mxu0 0
      %497 = vmatpush1.bf16.msra.mxu0 0
      %498 = vmatprep.subr.bf16.mxu0 0
      %499 = vmatpush1.bf16.msra.mxu0 0
      %500 = vmatprep.subr.bf16.mxu0 0
      %501 = vmatpush1.bf16.msra.mxu0 0
      %502 = vmatprep.subr.bf16.mxu0 0
      %503 = vmatpush1.bf16.msra.mxu0 0
      %504 = vmatprep.subr.bf16.mxu0 0
      %505 = vmatpush1.bf16.msra.mxu0 0
      %506 = vmatprep.subr.bf16.mxu0 0
      %507 = vmatpush1.bf16.msra.mxu0 0
      %508 = vmatprep.subr.bf16.mxu0 0
      %509 = vmatpush1.bf16.msra.mxu0 0
      %510 = vmatprep.subr.bf16.mxu0 0
      %511 = vmatpush1.bf16.msra.mxu0 0
      %512 = vmatprep.subr.bf16.mxu0 0
      %513 = vmatpush1.bf16.msra.mxu0 0
      %514 = vmatprep.subr.bf16.mxu0 0
      %515 = vmatpush1.bf16.msra.mxu0 0
      %516 = vmatprep.subr.bf16.mxu0 0
      %517 = vmatpush1.bf16.msra.mxu0 0
      %518 = vmatprep.subr.bf16.mxu0 0
      %519 = vmatpush1.bf16.msra.mxu0 0
      %520 = vmatprep.subr.bf16.mxu0 0
      %521 = vmatpush1.bf16.msra.mxu0 0
      %522 = vmatprep.mubr.bf16.mxu0 0
      %523 = vmatmul.mubr.bf16.gmra.mrb[0].mxu0 %v485
      %v524 = vpop.f32.mrb[0].mxu0
      %v525 = vadd.f32 0.0, %v524
      %v526 = vpop.f32.mrb[0].mxu0
      %v527 = vpop.f32.mrb[0].mxu0
      %v528 = vpop.f32.mrb[0].mxu0
      %529 = vdwg.mxu0
      %530 = vrot.lane.b32.xlu0 %v190, 64
      %v531 = vpop.permute.xlu0 %530
      %v533 = vsel %vm384, %v431, 0
      %v536 = vsel %vm438, %v531, 0
      %538 = vmatprep.subr.bf16.mxu0 0
      %539 = vmatpush1.bf16.msra.mxu0 %v536
      %540 = vmatprep.subr.bf16.mxu0 0
      %541 = vmatpush1.bf16.msra.mxu0 0
      %542 = vmatprep.subr.bf16.mxu0 0
      %543 = vmatpush1.bf16.msra.mxu0 0
      %544 = vmatprep.subr.bf16.mxu0 0
      %545 = vmatpush1.bf16.msra.mxu0 0
      %546 = vmatprep.subr.bf16.mxu0 0
      %547 = vmatpush1.bf16.msra.mxu0 0
      %548 = vmatprep.subr.bf16.mxu0 0
      %549 = vmatpush1.bf16.msra.mxu0 0
      %550 = vmatprep.subr.bf16.mxu0 0
      %551 = vmatpush1.bf16.msra.mxu0 0
      %552 = vmatprep.subr.bf16.mxu0 0
      %553 = vmatpush1.bf16.msra.mxu0 0
      %554 = vmatprep.subr.bf16.mxu0 0
      %555 = vmatpush1.bf16.msra.mxu0 0
      %556 = vmatprep.subr.bf16.mxu0 0
      %557 = vmatpush1.bf16.msra.mxu0 0
      %558 = vmatprep.subr.bf16.mxu0 0
      %559 = vmatpush1.bf16.msra.mxu0 0
      %560 = vmatprep.subr.bf16.mxu0 0
      %561 = vmatpush1.bf16.msra.mxu0 0
      %562 = vmatprep.subr.bf16.mxu0 0
      %563 = vmatpush1.bf16.msra.mxu0 0
      %564 = vmatprep.subr.bf16.mxu0 0
      %565 = vmatpush1.bf16.msra.mxu0 0
      %566 = vmatprep.subr.bf16.mxu0 0
      %567 = vmatpush1.bf16.msra.mxu0 0
      %568 = vmatprep.subr.bf16.mxu0 0
      %569 = vmatpush1.bf16.msra.mxu0 0
      %570 = vmatprep.mubr.bf16.mxu0 0
      %571 = vmatmul.mubr.bf16.gmra.mrb[0].mxu0 %v533
      %v572 = vpop.f32.mrb[0].mxu0
      %v573 = vadd.f32 0.0, %v572
      %v574 = vpop.f32.mrb[0].mxu0
      %v575 = vpop.f32.mrb[0].mxu0
      %v576 = vpop.f32.mrb[0].mxu0
      %577 = vdwg.mxu0
      %578 = vrot.lane.b32.xlu0 %v191, 64
      %v579 = vpop.permute.xlu0 %578
      %v581 = vsel %vm384, %v432, 0
      %v584 = vsel %vm438, %v579, 0
      %586 = vmatprep.subr.bf16.mxu0 0
      %587 = vmatpush1.bf16.msra.mxu0 %v584
      %588 = vmatprep.subr.bf16.mxu0 0
      %589 = vmatpush1.bf16.msra.mxu0 0
      %590 = vmatprep.subr.bf16.mxu0 0
      %591 = vmatpush1.bf16.msra.mxu0 0
      %592 = vmatprep.subr.bf16.mxu0 0
      %593 = vmatpush1.bf16.msra.mxu0 0
      %594 = vmatprep.subr.bf16.mxu0 0
      %595 = vmatpush1.bf16.msra.mxu0 0
      %596 = vmatprep.subr.bf16.mxu0 0
      %597 = vmatpush1.bf16.msra.mxu0 0
      %598 = vmatprep.subr.bf16.mxu0 0
      %599 = vmatpush1.bf16.msra.mxu0 0
      %600 = vmatprep.subr.bf16.mxu0 0
      %601 = vmatpush1.bf16.msra.mxu0 0
      %602 = vmatprep.subr.bf16.mxu0 0
      %603 = vmatpush1.bf16.msra.mxu0 0
      %604 = vmatprep.subr.bf16.mxu0 0
      %605 = vmatpush1.bf16.msra.mxu0 0
      %606 = vmatprep.subr.bf16.mxu0 0
      %607 = vmatpush1.bf16.msra.mxu0 0
      %608 = vmatprep.subr.bf16.mxu0 0
      %609 = vmatpush1.bf16.msra.mxu0 0
      %610 = vmatprep.subr.bf16.mxu0 0
      %611 = vmatpush1.bf16.msra.mxu0 0
      %612 = vmatprep.subr.bf16.mxu0 0
      %613 = vmatpush1.bf16.msra.mxu0 0
      %614 = vmatprep.subr.bf16.mxu0 0
      %615 = vmatpush1.bf16.msra.mxu0 0
      %616 = vmatprep.subr.bf16.mxu0 0
      %617 = vmatpush1.bf16.msra.mxu0 0
      %618 = vmatprep.mubr.bf16.mxu0 0
      %619 = vmatmul.mubr.bf16.gmra.mrb[0].mxu0 %v581
      %v620 = vpop.f32.mrb[0].mxu0
      %v621 = vadd.f32 0.0, %v620
      %v622 = vpop.f32.mrb[0].mxu0
      %v623 = vpop.f32.mrb[0].mxu0
      %v624 = vpop.f32.mrb[0].mxu0
      %625 = vdwg.mxu0
      %v626 = vpack.c.bf16 %v477, %v477
      %v627 = vpack.c.bf16 %v525, %v525
      %v628 = vpack.c.bf16 %v573, %v573
      %v629 = vpack.c.bf16 %v621, %v621
      %v630 = vld [vmem:[#allocation8] sm:$0xf]
      %v631 = vld [vmem:[#allocation8 + $0x4] sm:$0xf]
      %v632 = vld [vmem:[#allocation8 + $0x8] sm:$0xf]
      %v633 = vld [vmem:[#allocation8 + $0xc] sm:$0xf]
      %v634 = vld [vmem:[%s4] sm:$0x1]
      %v636 = vlaneseq
      %v637 = vshrl.u32 %v636, 7
      %v638 = vsub.s32 0, %v637
      %v639 = vrot.slane %v634, %v638
      %v645 = vunpack.c.l.b16 %v626
      %v646 = vunpack.c.l.b16 %v627
      %v647 = vunpack.c.l.b16 %v628
      %v648 = vunpack.c.l.b16 %v629
      %v649 = vpack.c.b16 %v646, %v645
      %v650 = vpack.c.b16 %v648, %v647
      %v655 = vunpack.c.l.b16 %v630
      %v656 = vunpack.c.l.b16 %v631
      %v657 = vunpack.c.l.b16 %v632
      %v658 = vunpack.c.l.b16 %v633
      %v659 = vpack.c.b16 %v656, %v655
      %v660 = vpack.c.b16 %v658, %v657
      %v664 = vsel %vm124, %v649, 0
      %v667 = vsel %vm124, %v650, 0
      %669 = vmatprep.subr.bf16.mxu0 0
      %670 = vmatpush1.bf16.msra.mxu0 %v659
      %671 = vmatprep.subr.bf16.mxu0 0
      %672 = vmatpush1.bf16.msra.mxu0 %v660
      %673 = vmatprep.subr.bf16.mxu0 0
      %674 = vmatpush1.bf16.msra.mxu0 0
      %675 = vmatprep.subr.bf16.mxu0 0
      %676 = vmatpush1.bf16.msra.mxu0 0
      %677 = vmatprep.subr.bf16.mxu0 0
      %678 = vmatpush1.bf16.msra.mxu0 0
      %679 = vmatprep.subr.bf16.mxu0 0
      %680 = vmatpush1.bf16.msra.mxu0 0
      %681 = vmatprep.subr.bf16.mxu0 0
      %682 = vmatpush1.bf16.msra.mxu0 0
      %683 = vmatprep.subr.bf16.mxu0 0
      %684 = vmatpush1.bf16.msra.mxu0 0
      %685 = vmatprep.subr.bf16.mxu0 0
      %686 = vmatpush1.bf16.msra.mxu0 0
      %687 = vmatprep.subr.bf16.mxu0 0
      %688 = vmatpush1.bf16.msra.mxu0 0
      %689 = vmatprep.subr.bf16.mxu0 0
      %690 = vmatpush1.bf16.msra.mxu0 0
      %691 = vmatprep.subr.bf16.mxu0 0
      %692 = vmatpush1.bf16.msra.mxu0 0
      %693 = vmatprep.subr.bf16.mxu0 0
      %694 = vmatpush1.bf16.msra.mxu0 0
      %695 = vmatprep.subr.bf16.mxu0 0
      %696 = vmatpush1.bf16.msra.mxu0 0
      %697 = vmatprep.subr.bf16.mxu0 0
      %698 = vmatpush1.bf16.msra.mxu0 0
      %699 = vmatprep.subr.bf16.mxu0 0
      %700 = vmatpush1.bf16.msra.mxu0 0
      %701 = vmatprep.mubr.bf16.mxu0 0
      %702 = vmatmul.mubr.bf16.gmra.mrb[0].mxu0 %v664
      %v703 = vpop.f32.mrb[0].mxu0
      %v704 = vadd.f32 %v639, %v703
      %v705 = vpop.f32.mrb[0].mxu0
      %v706 = vpop.f32.mrb[0].mxu0
      %v707 = vadd.f32 %v639, %v706
      %v708 = vpop.f32.mrb[0].mxu0
      %709 = vmatprep.mubr.bf16.mxu0 0
      %710 = vmatmul.mubr.bf16.gmra.mrb[0].mxu0 %v667
      %v711 = vpop.f32.mrb[0].mxu0
      %v712 = vadd.f32 %v639, %v711
      %v713 = vpop.f32.mrb[0].mxu0
      %v714 = vpop.f32.mrb[0].mxu0
      %v715 = vadd.f32 %v639, %v714
      %v716 = vpop.f32.mrb[0].mxu0
      %717 = vdwg.mxu0
      %v718 = vpack.c.bf16 %v707, %v704
      %v719 = vpack.c.bf16 %v715, %v712
      %720 = vst.msk [vmem:[#allocation2] sm:$0xff] %vm124, %v718
      %721 = vst.msk [vmem:[#allocation2 + $0x8] sm:$0xff] %vm124, %v719
    $region49: #{tpu_custom_call.1} parent=1 // pred_fallthru
      _
    %v722 = vld [vmem:[#allocation2] sm:$0xff]
    %v723 = vld [vmem:[#allocation2 + $0x8] sm:$0xff]
    %v724 = vld [vmem:[#allocation9] sm:$0xff]
    %v725 = vld [vmem:[#allocation9 + $0x8] sm:$0xf]
    %v726 = vld [vmem:[#allocation9 + $0xc] sm:$0xff]
    %v727 = vld [vmem:[#allocation9 + $0x14] sm:$0xf]
    %v728 = vld [vmem:[#allocation9 + $0x18] sm:$0xff]
    %v729 = vld [vmem:[#allocation9 + $0x20] sm:$0xf]
    %v730 = vld [vmem:[#allocation9 + $0x24] sm:$0xff]
    %v731 = vld [vmem:[#allocation9 + $0x2c] sm:$0xf]
    %v732 = vld [vmem:[%s6] sm:$0x7]
    %v734 = vlaneseq
    %v735 = vshrl.u32 %v734, 7
    %v736 = vsub.s32 0, %v735
    %v737 = vrot.slane %v732, %v736
    %v738 = vlaneseq
    %v739 = vshrl.u32 %v738, 7
    %v740 = vsub.s32 1, %v739
    %v741 = vrot.slane %v732, %v740
    %v742 = vlaneseq
    %v743 = vshrl.u32 %v742, 7
    %v744 = vsub.s32 2, %v743
    %v745 = vrot.slane %v732, %v744
    %v757 = vunpack.c.l.b16 %v724
    %v758 = vunpack.c.h.b16 %v724
    %v759 = vunpack.c.l.b16 %v725
    %v760 = vunpack.c.l.b16 %v726
    %v761 = vunpack.c.h.b16 %v726
    %v762 = vunpack.c.l.b16 %v727
    %v763 = vunpack.c.l.b16 %v728
    %v764 = vunpack.c.h.b16 %v728
    %v765 = vunpack.c.l.b16 %v729
    %v766 = vunpack.c.l.b16 %v730
    %v767 = vunpack.c.h.b16 %v730
    %v768 = vunpack.c.l.b16 %v731
    %v769 = vpack.c.b16 %v760, %v757
    %v770 = vpack.c.b16 %v761, %v758
    %v771 = vpack.c.b16 %v762, %v759
    %v772 = vpack.c.b16 %v766, %v763
    %v773 = vpack.c.b16 %v767, %v764
    %v774 = vpack.c.b16 %v768, %v765
    %vm781 = vcmask 261120
    %v783 = vsel %vm781, %v722, 0
    %v786 = vsel %vm781, %v723, 0
    %788 = vmatprep.subr.bf16.mxu0 %v770
    %789 = vmatpush1.bf16.msra.mxu0 %v769
    %790 = vmatprep.subr.bf16.mxu0 %v773
    %791 = vmatpush1.bf16.msra.mxu0 %v772
    %792 = vmatprep.subr.bf16.mxu0 0
    %793 = vmatpush1.bf16.msra.mxu0 0
    %794 = vmatprep.subr.bf16.mxu0 0
    %795 = vmatpush1.bf16.msra.mxu0 0
    %796 = vmatprep.subr.bf16.mxu0 0
    %797 = vmatpush1.bf16.msra.mxu0 0
    %798 = vmatprep.subr.bf16.mxu0 0
    %799 = vmatpush1.bf16.msra.mxu0 0
    %800 = vmatprep.subr.bf16.mxu0 0
    %801 = vmatpush1.bf16.msra.mxu0 0
    %802 = vmatprep.subr.bf16.mxu0 0
    %803 = vmatpush1.bf16.msra.mxu0 0
    %804 = vmatprep.subr.bf16.mxu0 0
    %805 = vmatpush1.bf16.msra.mxu0 0
    %806 = vmatprep.subr.bf16.mxu0 0
    %807 = vmatpush1.bf16.msra.mxu0 0
    %808 = vmatprep.subr.bf16.mxu0 0
    %809 = vmatpush1.bf16.msra.mxu0 0
    %810 = vmatprep.subr.bf16.mxu0 0
    %811 = vmatpush1.bf16.msra.mxu0 0
    %812 = vmatprep.subr.bf16.mxu0 0
    %813 = vmatpush1.bf16.msra.mxu0 0
    %814 = vmatprep.subr.bf16.mxu0 0
    %815 = vmatpush1.bf16.msra.mxu0 0
    %816 = vmatprep.subr.bf16.mxu0 0
    %817 = vmatpush1.bf16.msra.mxu0 0
    %818 = vmatprep.subr.bf16.mxu0 0
    %819 = vmatpush1.bf16.msra.mxu0 0
    %820 = vmatprep.mubr.bf16.mxu0 0
    %821 = vmatmul.mubr.bf16.gmra.mrb[0].mxu0 %v783
    %v822 = vpop.f32.mrb[0].mxu0
    %v823 = vadd.f32 %v737, %v822
    %v824 = vpop.f32.mrb[0].mxu0
    %v825 = vadd.f32 %v741, %v824
    %v826 = vpop.f32.mrb[0].mxu0
    %v827 = vadd.f32 %v737, %v826
    %v828 = vpop.f32.mrb[0].mxu0
    %v829 = vadd.f32 %v741, %v828
    %830 = vmatprep.mubr.bf16.mxu0 0
    %831 = vmatmul.mubr.bf16.gmra.mrb[0].mxu0 %v786
    %v832 = vpop.f32.mrb[0].mxu0
    %v833 = vadd.f32 %v737, %v832
    %v834 = vpop.f32.mrb[0].mxu0
    %v835 = vadd.f32 %v741, %v834
    %v836 = vpop.f32.mrb[0].mxu0
    %v837 = vadd.f32 %v737, %v836
    %v838 = vpop.f32.mrb[0].mxu0
    %v839 = vadd.f32 %v741, %v838
    %840 = vdwg.mxu0
    %841 = vmatprep.subr.bf16.mxu0 0
    %842 = vmatpush1.bf16.msra.mxu0 %v771
    %843 = vmatprep.subr.bf16.mxu0 0
    %844 = vmatpush1.bf16.msra.mxu0 %v774
    %845 = vmatprep.subr.bf16.mxu0 0
    %846 = vmatpush1.bf16.msra.mxu0 0
    %847 = vmatprep.subr.bf16.mxu0 0
    %848 = vmatpush1.bf16.msra.mxu0 0
    %849 = vmatprep.subr.bf16.mxu0 0
    %850 = vmatpush1.bf16.msra.mxu0 0
    %851 = vmatprep.subr.bf16.mxu0 0
    %852 = vmatpush1.bf16.msra.mxu0 0
    %853 = vmatprep.subr.bf16.mxu0 0
    %854 = vmatpush1.bf16.msra.mxu0 0
    %855 = vmatprep.subr.bf16.mxu0 0
    %856 = vmatpush1.bf16.msra.mxu0 0
    %857 = vmatprep.subr.bf16.mxu0 0
    %858 = vmatpush1.bf16.msra.mxu0 0
    %859 = vmatprep.subr.bf16.mxu0 0
    %860 = vmatpush1.bf16.msra.mxu0 0
    %861 = vmatprep.subr.bf16.mxu0 0
    %862 = vmatpush1.bf16.msra.mxu0 0
    %863 = vmatprep.subr.bf16.mxu0 0
    %864 = vmatpush1.bf16.msra.mxu0 0
    %865 = vmatprep.subr.bf16.mxu0 0
    %866 = vmatpush1.bf16.msra.mxu0 0
    %867 = vmatprep.subr.bf16.mxu0 0
    %868 = vmatpush1.bf16.msra.mxu0 0
    %869 = vmatprep.subr.bf16.mxu0 0
    %870 = vmatpush1.bf16.msra.mxu0 0
    %871 = vmatprep.subr.bf16.mxu0 0
    %872 = vmatpush1.bf16.msra.mxu0 0
    %873 = vmatprep.mubr.bf16.mxu0 0
    %874 = vmatmul.mubr.bf16.gmra.mrb[0].mxu0 %v783
    %v875 = vpop.f32.mrb[0].mxu0
    %v876 = vadd.f32 %v745, %v875
    %v877 = vpop.f32.mrb[0].mxu0
    %v878 = vpop.f32.mrb[0].mxu0
    %v879 = vadd.f32 %v745, %v878
    %v880 = vpop.f32.mrb[0].mxu0
    %881 = vmatprep.mubr.bf16.mxu0 0
    %882 = vmatmul.mubr.bf16.gmra.mrb[0].mxu0 %v786
    %v883 = vpop.f32.mrb[0].mxu0
    %v884 = vadd.f32 %v745, %v883
    %v885 = vpop.f32.mrb[0].mxu0
    %v886 = vpop.f32.mrb[0].mxu0
    %v887 = vadd.f32 %v745, %v886
    %v888 = vpop.f32.mrb[0].mxu0
    %889 = vdwg.mxu0
    %890 = vst [vmem:[#allocation11] sm:$0xff] %v823
    %891 = vst [vmem:[#allocation11 + $0x8] sm:$0xff] %v825
    %892 = vst [vmem:[#allocation11 + $0x10] sm:$0xff] %v876
    %893 = vst [vmem:[#allocation11 + $0x18] sm:$0xff] %v827
    %894 = vst [vmem:[#allocation11 + $0x20] sm:$0xff] %v829
    %895 = vst [vmem:[#allocation11 + $0x28] sm:$0xff] %v879
    %896 = vst [vmem:[#allocation11 + $0x30] sm:$0xff] %v833
    %897 = vst [vmem:[#allocation11 + $0x38] sm:$0xff] %v835
    %898 = vst [vmem:[#allocation11 + $0x40] sm:$0xff] %v884
    %899 = vst [vmem:[#allocation11 + $0x48] sm:$0xff] %v837
    %900 = vst [vmem:[#allocation11 + $0x50] sm:$0xff] %v839
    %901 = vst [vmem:[#allocation11 + $0x58] sm:$0xff] %v887
    // Predicated region
    $region50: #{tpu_custom_call.1} parent=1 // pred_check
      _
    $region51: #{tpu_custom_call.1} parent=1 // pred_check_branch
      %903 = sbr.rel (0) target = $region53
    $region52: #{tpu_custom_call.1} parent=1 // pred_region
      %s905 = ssub.s32 1536, 1536
      %906 = vsyncadd [#allocation5], %s905
      %s907 = sshll.u32 [#allocation11], 4
      %s908 = int_to_ptr.vmem [resolvable:$true] %s907
      %913 = dma.vmem_to_hbm [thread:$0]  %s908, 1536, %s7, [#allocation5], 384, 384, 24
    $region53: #{tpu_custom_call.1} parent=1 // pred_fallthru
      _
    // Predicated region
    $region54: #{tpu_custom_call.1} parent=1 // pred_check
      _
    $region55: #{tpu_custom_call.1} parent=1 // pred_check_branch
      %915 = sbr.rel (0) target = $region57
    $region56: #{tpu_custom_call.1} parent=1 // pred_region
      %916 = dma.done [#allocation5], 1536
    $region57: #{tpu_custom_call.1} parent=1 // pred_fallthru
      _
    %917 = vsyncpa [#allocation4], 1
    %918 = vsyncpa [#allocation7], 1
    %919 = vsyncpa [#allocation10], 1
    %920 = vsyncpa [#allocation5], 1

// kernel: tpu_custom_call.1
$region0: #{tpu_custom_call.1}
  #allocation0 [shape = 'u32[]', space=smem, size = 0x4, offset = 0x4, fixed_abs, tag = 'smem constant byte address 0x4 - core index']
  #allocation1 [shape = 'u32[144,128]{1,0:T(1,128)}', space=vmem, size = 0x12000, scoped, tag = 'internal scratch']
  #allocation2 [shape = 'bf16[32,32]{1,0:T(16,128)(2,1)}', space=vmem, size = 0x2000, scoped, tag = 'scratch operand']
  %s0 = inlined_call_operand.hbm [shape: bf16[32,32], index: 0, kind: input, shape index: {}]
  %s1 = inlined_call_operand.hbm [shape: bf16[32,96], index: 1, kind: input, shape index: {}]
  %s2 = inlined_call_operand.vmem [shape: f32[1,96], index: 2, kind: input, shape index: {}]
  %s3 = inlined_call_operand.hbm [shape: bf16[32,32], index: 3, kind: input, shape index: {}]
  %s4 = inlined_call_operand.vmem [shape: f32[1,32], index: 4, kind: input, shape index: {}]
  %s5 = inlined_call_operand.hbm [shape: bf16[32,384], index: 5, kind: input, shape index: {}]
  %s6 = inlined_call_operand.vmem [shape: f32[1,384], index: 6, kind: input, shape index: {}]
  %s7 = inlined_call_operand.hbm [shape: f32[32,384], index: 7, kind: output, shape index: {}]
  %s8 = sld [smem:[#allocation0]]
  $region58: #{tpu_custom_call.1} parent=0
    _
  %s10 = ssub.s32 1, %s8
  %s11 = scalar_select 0, %s10, %s8
  $region1: #{tpu_custom_call.1} parent=0
    #allocation3 [shape = 'u8[8192]{0}', space=vmem, size = 0x2000, scoped, tag = 'input window, operand 0, single buffered']
    #allocation4 [shape = 's32[1]{0}', space=sflag, size = 0x4, scoped, tag = 'scoped memory for tpu_custom_call.1']
    #allocation5 [shape = 's32[1]{0}', space=sflag, size = 0x4, scoped, tag = 'scoped memory for tpu_custom_call.1']
    #allocation6 [shape = 'u8[8192]{0}', space=vmem, size = 0x2000, scoped, tag = 'input window, operand 1, single buffered']
    #allocation7 [shape = 's32[1]{0}', space=sflag, size = 0x4, scoped, tag = 'scoped memory for tpu_custom_call.1']
    #allocation8 [shape = 'u8[8192]{0}', space=vmem, size = 0x2000, scoped, tag = 'input window, operand 3, single buffered']
    #allocation9 [shape = 'u8[24576]{0}', space=vmem, size = 0x6000, scoped, tag = 'input window, operand 5, single buffered']
    #allocation10 [shape = 's32[1]{0}', space=sflag, size = 0x4, scoped, tag = 'scoped memory for tpu_custom_call.1']
    #allocation11 [shape = 'u8[49152]{0}', space=vmem, size = 0xc000, scoped, tag = 'output window, operand 0, single buffered']
    %12 = vsyncpa [#allocation4], 0
    %13 = vsyncpa [#allocation7], 0
    %14 = vsyncpa [#allocation10], 0
    %15 = vsyncpa [#allocation5], 0
    // Predicated region
    $region2: #{tpu_custom_call.1} parent=1 // pred_check
      _
    $region3: #{tpu_custom_call.1} parent=1 // pred_check_branch
      %17 = sbr.rel (0) target = $region5
    $region4: #{tpu_custom_call.1} parent=1 // pred_region
      %s19 = ssub.s32 256, 256
      %20 = vsyncadd [#allocation4], %s19
      %s21 = sshll.u32 [#allocation3], 4
      %s22 = int_to_ptr.vmem [resolvable:$true] %s21
      %27 = dma.hbm_to_vmem [thread:$0]  %s0, 256, %s22, [#allocation4], 64, 64, 4
    $region5: #{tpu_custom_call.1} parent=1 // pred_fallthru
      _
    // Predicated region
    $region6: #{tpu_custom_call.1} parent=1 // pred_check
      _
    $region7: #{tpu_custom_call.1} parent=1 // pred_check_branch
      %29 = sbr.rel (0) target = $region9
    $region8: #{tpu_custom_call.1} parent=1 // pred_region
      %s31 = ssub.s32 256, 256
      %32 = vsyncadd [#allocation7], %s31
      %s33 = sshll.u32 [#allocation6], 4
      %s34 = int_to_ptr.vmem [resolvable:$true] %s33
      %39 = dma.hbm_to_vmem [thread:$0]  %s1, 256, %s34, [#allocation7], 64, 64, 4
    $region9: #{tpu_custom_call.1} parent=1 // pred_fallthru
      _
    // Predicated region
    $region10: #{tpu_custom_call.1} parent=1 // pred_check
      _
    $region11: #{tpu_custom_call.1} parent=1 // pred_check_branch
      %41 = sbr.rel (0) target = $region13
    $region12: #{tpu_custom_call.1} parent=1 // pred_region
      _
    $region13: #{tpu_custom_call.1} parent=1 // pred_fallthru
      _
    // Predicated region
    $region14: #{tpu_custom_call.1} parent=1 // pred_check
      _
    $region15: #{tpu_custom_call.1} parent=1 // pred_check_branch
      %43 = sbr.rel (0) target = $region17
    $region16: #{tpu_custom_call.1} parent=1 // pred_region
      %s45 = ssub.s32 256, 256
      %46 = vsyncadd [#allocation7], %s45
      %s47 = sshll.u32 [#allocation8], 4
      %s48 = int_to_ptr.vmem [resolvable:$true] %s47
      %53 = dma.hbm_to_vmem [thread:$0]  %s3, 256, %s48, [#allocation7], 64, 64, 4
    $region17: #{tpu_custom_call.1} parent=1 // pred_fallthru
      _
    // Predicated region
    $region18: #{tpu_custom_call.1} parent=1 // pred_check
      _
    $region19: #{tpu_custom_call.1} parent=1 // pred_check_branch
      %55 = sbr.rel (0) target = $region21
    $region20: #{tpu_custom_call.1} parent=1 // pred_region
      _
    $region21: #{tpu_custom_call.1} parent=1 // pred_fallthru
      _
    // Predicated region
    $region22: #{tpu_custom_call.1} parent=1 // pred_check
      _
    $region23: #{tpu_custom_call.1} parent=1 // pred_check_branch
      %57 = sbr.rel (0) target = $region25
    $region24: #{tpu_custom_call.1} parent=1 // pred_region
      %s59 = ssub.s32 768, 768
      %60 = vsyncadd [#allocation10], %s59
      %s61 = sshll.u32 [#allocation9], 4
      %s62 = int_to_ptr.vmem [resolvable:$true] %s61
      %67 = dma.hbm_to_vmem [thread:$0]  %s5, 768, %s62, [#allocation10], 192, 192, 12
    $region25: #{tpu_custom_call.1} parent=1 // pred_fallthru
      _
    // Predicated region
    $region26: #{tpu_custom_call.1} parent=1 // pred_check
      _
    $region27: #{tpu_custom_call.1} parent=1 // pred_check_branch
      %69 = sbr.rel (0) target = $region29
    $region28: #{tpu_custom_call.1} parent=1 // pred_region
      _
    $region29: #{tpu_custom_call.1} parent=1 // pred_fallthru
      _
    // Predicated region
    $region30: #{tpu_custom_call.1} parent=1 // pred_check
      _
    $region31: #{tpu_custom_call.1} parent=1 // pred_check_branch
      %71 = sbr.rel (0) target = $region33
    $region32: #{tpu_custom_call.1} parent=1 // pred_region
      %72 = dma.done [#allocation4], 256
    $region33: #{tpu_custom_call.1} parent=1 // pred_fallthru
      _
    // Predicated region
    $region34: #{tpu_custom_call.1} parent=1 // pred_check
      _
    $region35: #{tpu_custom_call.1} parent=1 // pred_check_branch
      %74 = sbr.rel (0) target = $region37
    $region36: #{tpu_custom_call.1} parent=1 // pred_region
      %75 = dma.done [#allocation7], 256
    $region37: #{tpu_custom_call.1} parent=1 // pred_fallthru
      _
    // Predicated region
    $region38: #{tpu_custom_call.1} parent=1 // pred_check
      _
    $region39: #{tpu_custom_call.1} parent=1 // pred_check_branch
      %77 = sbr.rel (0) target = $region41
    $region40: #{tpu_custom_call.1} parent=1 // pred_region
      %78 = dma.done [#allocation7], 256
    $region41: #{tpu_custom_call.1} parent=1 // pred_fallthru
      _
    // Predicated region
    $region42: #{tpu_custom_call.1} parent=1 // pred_check
      _
    $region43: #{tpu_custom_call.1} parent=1 // pred_check_branch
      %80 = sbr.rel (0) target = $region45
    $region44: #{tpu_custom_call.1} parent=1 // pred_region
      %81 = dma.done [#allocation10], 768
    $region45: #{tpu_custom_call.1} parent=1 // pred_fallthru
      _
    %p83 = scmp.eq.s32.totalorder 0, 0
    // Predicated region
    $region46: #{tpu_custom_call.1} parent=1 // pred_check
      %p84 = pneg %p83
    $region47: #{tpu_custom_call.1} parent=1 // pred_check_branch
      %86 = sbr.rel (%p84) target = $region49
    $region48: #{tpu_custom_call.1} parent=1 // pred_region
      %v87 = vld [vmem:[#allocation3] sm:$0xf]
      %v88 = vld [vmem:[#allocation3 + $0x4] sm:$0xf]
      %v89 = vld [vmem:[#allocation3 + $0x8] sm:$0xf]
      %v90 = vld [vmem:[#allocation3 + $0xc] sm:$0xf]
      %v91 = vld [vmem:[#allocation6] sm:$0xf]
      %v92 = vld [vmem:[#allocation6 + $0x4] sm:$0xf]
      %v93 = vld [vmem:[#allocation6 + $0x8] sm:$0xf]
      %v94 = vld [vmem:[#allocation6 + $0xc] sm:$0xf]
      %v95 = vld [vmem:[%s2] sm:$0x1]
      %v97 = vlaneseq
      %v98 = vshrl.u32 %v97, 7
      %v99 = vsub.s32 0, %v98
      %v100 = vrot.slane %v95, %v99
      %v106 = vunpack.c.l.b16 %v87
      %v107 = vunpack.c.l.b16 %v88
      %v108 = vunpack.c.l.b16 %v89
      %v109 = vunpack.c.l.b16 %v90
      %v110 = vpack.c.b16 %v107, %v106
      %v111 = vpack.c.b16 %v109, %v108
      %v116 = vunpack.c.l.b16 %v91
      %v117 = vunpack.c.l.b16 %v92
      %v118 = vunpack.c.l.b16 %v93
      %v119 = vunpack.c.l.b16 %v94
      %v120 = vpack.c.b16 %v117, %v116
      %v121 = vpack.c.b16 %v119, %v118
      %vm124 = vcmask 261120
      %v126 = vsel %vm124, %v110, 0
      %v129 = vsel %vm124, %v111, 0
      %131 = vmatprep.subr.bf16.mxu0 0
      %132 = vmatpush1.bf16.msra.mxu0 %v120
      %133 = vmatprep.subr.bf16.mxu0 0
      %134 = vmatpush1.bf16.msra.mxu0 %v121
      %135 = vmatprep.subr.bf16.mxu0 0
      %136 = vmatpush1.bf16.msra.mxu0 0
      %137 = vmatprep.subr.bf16.mxu0 0
      %138 = vmatpush1.bf16.msra.mxu0 0
      %139 = vmatprep.subr.bf16.mxu0 0
      %140 = vmatpush1.bf16.msra.mxu0 0
      %141 = vmatprep.subr.bf16.mxu0 0
      %142 = vmatpush1.bf16.msra.mxu0 0
      %143 = vmatprep.subr.bf16.mxu0 0
      %144 = vmatpush1.bf16.msra.mxu0 0
      %145 = vmatprep.subr.bf16.mxu0 0
      %146 = vmatpush1.bf16.msra.mxu0 0
      %147 = vmatprep.subr.bf16.mxu0 0
      %148 = vmatpush1.bf16.msra.mxu0 0
      %149 = vmatprep.subr.bf16.mxu0 0
      %150 = vmatpush1.bf16.msra.mxu0 0
      %151 = vmatprep.subr.bf16.mxu0 0
      %152 = vmatpush1.bf16.msra.mxu0 0
      %153 = vmatprep.subr.bf16.mxu0 0
      %154 = vmatpush1.bf16.msra.mxu0 0
      %155 = vmatprep.subr.bf16.mxu0 0
      %156 = vmatpush1.bf16.msra.mxu0 0
      %157 = vmatprep.subr.bf16.mxu0 0
      %158 = vmatpush1.bf16.msra.mxu0 0
      %159 = vmatprep.subr.bf16.mxu0 0
      %160 = vmatpush1.bf16.msra.mxu0 0
      %161 = vmatprep.subr.bf16.mxu0 0
      %162 = vmatpush1.bf16.msra.mxu0 0
      %163 = vmatprep.mubr.bf16.mxu0 0
      %164 = vmatmul.mubr.bf16.gmra.mrb[0].mxu0 %v126
      %v165 = vpop.f32.mrb[0].mxu0
      %v166 = vadd.f32 %v100, %v165
      %v167 = vpop.f32.mrb[0].mxu0
      %v168 = vpop.f32.mrb[0].mxu0
      %v169 = vadd.f32 %v100, %v168
      %v170 = vpop.f32.mrb[0].mxu0
      %171 = vmatprep.mubr.bf16.mxu0 0
      %172 = vmatmul.mubr.bf16.gmra.mrb[0].mxu0 %v129
      %v173 = vpop.f32.mrb[0].mxu0
      %v174 = vadd.f32 %v100, %v173
      %v175 = vpop.f32.mrb[0].mxu0
      %v176 = vpop.f32.mrb[0].mxu0
      %v177 = vadd.f32 %v100, %v176
      %v178 = vpop.f32.mrb[0].mxu0
      %179 = vdwg.mxu0
      %v180 = vpack.c.bf16 %v169, %v166
      %v181 = vpack.c.bf16 %v177, %v174
      %v184 = vunpack.c.l.b16 %v180
      %v185 = vunpack.c.h.b16 %v180
      %v186 = vunpack.c.l.b16 %v181
      %v187 = vunpack.c.h.b16 %v181
      %v188 = vpack.c.b16 %v184, %v184
      %v189 = vpack.c.b16 %v185, %v185
      %v190 = vpack.c.b16 %v186, %v186
      %v191 = vpack.c.b16 %v187, %v187
      %192 = vrot.lane.b32.xlu0 %v188, 96
      %v193 = vpop.permute.xlu0 %192
      %v195 = vsel %vm124, %v188, 0
      %v198 = vsel %vm124, %v193, 0
      %200 = vmatprep.subr.bf16.mxu0 0
      %201 = vmatpush1.bf16.xpose.msra.mxu0 %v198
      %202 = vmatprep.subr.bf16.mxu0 0
      %203 = vmatpush1.bf16.xpose.msra.mxu0 0
      %204 = vmatprep.subr.bf16.mxu0 0
      %205 = vmatpush1.bf16.xpose.msra.mxu0 0
      %206 = vmatprep.subr.bf16.mxu0 0
      %207 = vmatpush1.bf16.xpose.msra.mxu0 0
      %208 = vmatprep.subr.bf16.mxu0 0
      %209 = vmatpush1.bf16.xpose.msra.mxu0 0
      %210 = vmatprep.subr.bf16.mxu0 0
      %211 = vmatpush1.bf16.xpose.msra.mxu0 0
      %212 = vmatprep.subr.bf16.mxu0 0
      %213 = vmatpush1.bf16.xpose.msra.mxu0 0
      %214 = vmatprep.subr.bf16.mxu0 0
      %215 = vmatpush1.bf16.xpose.msra.mxu0 0
      %216 = vmatprep.subr.bf16.mxu0 0
      %217 = vmatpush1.bf16.xpose.msra.mxu0 0
      %218 = vmatprep.subr.bf16.mxu0 0
      %219 = vmatpush1.bf16.xpose.msra.mxu0 0
      %220 = vmatprep.subr.bf16.mxu0 0
      %221 = vmatpush1.bf16.xpose.msra.mxu0 0
      %222 = vmatprep.subr.bf16.mxu0 0
      %223 = vmatpush1.bf16.xpose.msra.mxu0 0
      %224 = vmatprep.subr.bf16.mxu0 0
      %225 = vmatpush1.bf16.xpose.msra.mxu0 0
      %226 = vmatprep.subr.bf16.mxu0 0
      %227 = vmatpush1.bf16.xpose.msra.mxu0 0
      %228 = vmatprep.subr.bf16.mxu0 0
      %229 = vmatpush1.bf16.xpose.msra.mxu0 0
      %230 = vmatprep.subr.bf16.mxu0 0
      %231 = vmatpush1.bf16.xpose.msra.mxu0 0
      %232 = vmatprep.mubr.bf16.mxu0 0
      %233 = vmatmul.mubr.bf16.gmra.mrb[0].mxu0 %v195
      %v234 = vpop.f32.mrb[0].mxu0
      %v235 = vadd.f32 0.0, %v234
      %v236 = vpop.f32.mrb[0].mxu0
      %v237 = vpop.f32.mrb[0].mxu0
      %v238 = vpop.f32.mrb[0].mxu0
      %239 = vdwg.mxu0
      %240 = vrot.lane.b32.xlu0 %v189, 96
      %v241 = vpop.permute.xlu0 %240
      %v243 = vsel %vm124, %v189, 0
      %v246 = vsel %vm124, %v241, 0
      %248 = vmatprep.subr.bf16.mxu0 0
      %249 = vmatpush1.bf16.xpose.msra.mxu0 %v246
      %250 = vmatprep.subr.bf16.mxu0 0
      %251 = vmatpush1.bf16.xpose.msra.mxu0 0
      %252 = vmatprep.subr.bf16.mxu0 0
      %253 = vmatpush1.bf16.xpose.msra.mxu0 0
      %254 = vmatprep.subr.bf16.mxu0 0
      %255 = vmatpush1.bf16.xpose.msra.mxu0 0
      %256 = vmatprep.subr.bf16.mxu0 0
      %257 = vmatpush1.bf16.xpose.msra.mxu0 0
      %258 = vmatprep.subr.bf16.mxu0 0
      %259 = vmatpush1.bf16.xpose.msra.mxu0 0
      %260 = vmatprep.subr.bf16.mxu0 0
      %261 = vmatpush1.bf16.xpose.msra.mxu0 0
      %262 = vmatprep.subr.bf16.mxu0 0
      %263 = vmatpush1.bf16.xpose.msra.mxu0 0
      %264 = vmatprep.subr.bf16.mxu0 0
      %265 = vmatpush1.bf16.xpose.msra.mxu0 0
      %266 = vmatprep.subr.bf16.mxu0 0
      %267 = vmatpush1.bf16.xpose.msra.mxu0 0
      %268 = vmatprep.subr.bf16.mxu0 0
      %269 = vmatpush1.bf16.xpose.msra.mxu0 0
      %270 = vmatprep.subr.bf16.mxu0 0
      %271 = vmatpush1.bf16.xpose.msra.mxu0 0
      %272 = vmatprep.subr.bf16.mxu0 0
      %273 = vmatpush1.bf16.xpose.msra.mxu0 0
      %274 = vmatprep.subr.bf16.mxu0 0
      %275 = vmatpush1.bf16.xpose.msra.mxu0 0
      %276 = vmatprep.subr.bf16.mxu0 0
      %277 = vmatpush1.bf16.xpose.msra.mxu0 0
      %278 = vmatprep.subr.bf16.mxu0 0
      %279 = vmatpush1.bf16.xpose.msra.mxu0 0
      %280 = vmatprep.mubr.bf16.mxu0 0
      %281 = vmatmul.mubr.bf16.gmra.mrb[0].mxu0 %v243
      %v282 = vpop.f32.mrb[0].mxu0
      %v283 = vadd.f32 0.0, %v282
      %v284 = vpop.f32.mrb[0].mxu0
      %v285 = vpop.f32.mrb[0].mxu0
      %v286 = vpop.f32.mrb[0].mxu0
      %287 = vdwg.mxu0
      %288 = vrot.lane.b32.xlu0 %v190, 96
      %v289 = vpop.permute.xlu0 %288
      %v291 = vsel %vm124, %v190, 0
      %v294 = vsel %vm124, %v289, 0
      %296 = vmatprep.subr.bf16.mxu0 0
      %297 = vmatpush1.bf16.xpose.msra.mxu0 %v294
      %298 = vmatprep.subr.bf16.mxu0 0
      %299 = vmatpush1.bf16.xpose.msra.mxu0 0
      %300 = vmatprep.subr.bf16.mxu0 0
      %301 = vmatpush1.bf16.xpose.msra.mxu0 0
      %302 = vmatprep.subr.bf16.mxu0 0
      %303 = vmatpush1.bf16.xpose.msra.mxu0 0
      %304 = vmatprep.subr.bf16.mxu0 0
      %305 = vmatpush1.bf16.xpose.msra.mxu0 0
      %306 = vmatprep.subr.bf16.mxu0 0
      %307 = vmatpush1.bf16.xpose.msra.mxu0 0
      %308 = vmatprep.subr.bf16.mxu0 0
      %309 = vmatpush1.bf16.xpose.msra.mxu0 0
      %310 = vmatprep.subr.bf16.mxu0 0
      %311 = vmatpush1.bf16.xpose.msra.mxu0 0
      %312 = vmatprep.subr.bf16.mxu0 0
      %313 = vmatpush1.bf16.xpose.msra.mxu0 0
      %314 = vmatprep.subr.bf16.mxu0 0
      %315 = vmatpush1.bf16.xpose.msra.mxu0 0
      %316 = vmatprep.subr.bf16.mxu0 0
      %317 = vmatpush1.bf16.xpose.msra.mxu0 0
      %318 = vmatprep.subr.bf16.mxu0 0
      %319 = vmatpush1.bf16.xpose.msra.mxu0 0
      %320 = vmatprep.subr.bf16.mxu0 0
      %321 = vmatpush1.bf16.xpose.msra.mxu0 0
      %322 = vmatprep.subr.bf16.mxu0 0
      %323 = vmatpush1.bf16.xpose.msra.mxu0 0
      %324 = vmatprep.subr.bf16.mxu0 0
      %325 = vmatpush1.bf16.xpose.msra.mxu0 0
      %326 = vmatprep.subr.bf16.mxu0 0
      %327 = vmatpush1.bf16.xpose.msra.mxu0 0
      %328 = vmatprep.mubr.bf16.mxu0 0
      %329 = vmatmul.mubr.bf16.gmra.mrb[0].mxu0 %v291
      %v330 = vpop.f32.mrb[0].mxu0
      %v331 = vadd.f32 0.0, %v330
      %v332 = vpop.f32.mrb[0].mxu0
      %v333 = vpop.f32.mrb[0].mxu0
      %v334 = vpop.f32.mrb[0].mxu0
      %335 = vdwg.mxu0
      %336 = vrot.lane.b32.xlu0 %v191, 96
      %v337 = vpop.permute.xlu0 %336
      %v339 = vsel %vm124, %v191, 0
      %v342 = vsel %vm124, %v337, 0
      %344 = vmatprep.subr.bf16.mxu0 0
      %345 = vmatpush1.bf16.xpose.msra.mxu0 %v342
      %346 = vmatprep.subr.bf16.mxu0 0
      %347 = vmatpush1.bf16.xpose.msra.mxu0 0
      %348 = vmatprep.subr.bf16.mxu0 0
      %349 = vmatpush1.bf16.xpose.msra.mxu0 0
      %350 = vmatprep.subr.bf16.mxu0 0
      %351 = vmatpush1.bf16.xpose.msra.mxu0 0
      %352 = vmatprep.subr.bf16.mxu0 0
      %353 = vmatpush1.bf16.xpose.msra.mxu0 0
      %354 = vmatprep.subr.bf16.mxu0 0
      %355 = vmatpush1.bf16.xpose.msra.mxu0 0
      %356 = vmatprep.subr.bf16.mxu0 0
      %357 = vmatpush1.bf16.xpose.msra.mxu0 0
      %358 = vmatprep.subr.bf16.mxu0 0
      %359 = vmatpush1.bf16.xpose.msra.mxu0 0
      %360 = vmatprep.subr.bf16.mxu0 0
      %361 = vmatpush1.bf16.xpose.msra.mxu0 0
      %362 = vmatprep.subr.bf16.mxu0 0
      %363 = vmatpush1.bf16.xpose.msra.mxu0 0
      %364 = vmatprep.subr.bf16.mxu0 0
      %365 = vmatpush1.bf16.xpose.msra.mxu0 0
      %366 = vmatprep.subr.bf16.mxu0 0
      %367 = vmatpush1.bf16.xpose.msra.mxu0 0
      %368 = vmatprep.subr.bf16.mxu0 0
      %369 = vmatpush1.bf16.xpose.msra.mxu0 0
      %370 = vmatprep.subr.bf16.mxu0 0
      %371 = vmatpush1.bf16.xpose.msra.mxu0 0
      %372 = vmatprep.subr.bf16.mxu0 0
      %373 = vmatpush1.bf16.xpose.msra.mxu0 0
      %374 = vmatprep.subr.bf16.mxu0 0
      %375 = vmatpush1.bf16.xpose.msra.mxu0 0
      %376 = vmatprep.mubr.bf16.mxu0 0
      %377 = vmatmul.mubr.bf16.gmra.mrb[0].mxu0 %v339
      %v378 = vpop.f32.mrb[0].mxu0
      %v379 = vadd.f32 0.0, %v378
      %v380 = vpop.f32.mrb[0].mxu0
      %v381 = vpop.f32.mrb[0].mxu0
      %v382 = vpop.f32.mrb[0].mxu0
      %383 = vdwg.mxu0
      %vm384 = vcmask 64512
      %v385 = vsel %vm384, %v235, -inf
      %386 = vmax.xlane.f32.xlu0 %v385
      %v387 = vpop.xlane.xlu0 %386
      %v388 = vsel %vm384, %v283, -inf
      %389 = vmax.xlane.f32.xlu0 %v388
      %v390 = vpop.xlane.xlu0 %389
      %v391 = vsel %vm384, %v331, -inf
      %392 = vmax.xlane.f32.xlu0 %v391
      %v393 = vpop.xlane.xlu0 %392
      %v394 = vsel %vm384, %v379, -inf
      %395 = vmax.xlane.f32.xlu0 %v394
      %v396 = vpop.xlane.xlu0 %395
      %v397 = vsub.f32 %v235, %v387
      %v398 = vsub.f32 %v283, %v390
      %v399 = vsub.f32 %v331, %v393
      %v400 = vsub.f32 %v379, %v396
      %v401 = vmul.f32 %v397, 1.442695
      %v402 = vpow.pop %v401
      %v403 = vmul.f32 %v398, 1.442695
      %v404 = vpow.pop %v403
      %v405 = vmul.f32 %v399, 1.442695
      %v406 = vpow.pop %v405
      %v407 = vmul.f32 %v400, 1.442695
      %v408 = vpow.pop %v407
      %v409 = vsel %vm384, %v402, 0.0
      %410 = vadd.xlane.f32.xlu0 %v409
      %v411 = vpop.xlane.xlu0 %410
      %v412 = vsel %vm384, %v404, 0.0
      %413 = vadd.xlane.f32.xlu0 %v412
      %v414 = vpop.xlane.xlu0 %413
      %v415 = vsel %vm384, %v406, 0.0
      %416 = vadd.xlane.f32.xlu0 %v415
      %v417 = vpop.xlane.xlu0 %416
      %v418 = vsel %vm384, %v408, 0.0
      %419 = vadd.xlane.f32.xlu0 %v418
      %v420 = vpop.xlane.xlu0 %419
      %v421 = vrcp.pop %v411
      %v422 = vrcp.pop %v414
      %v423 = vrcp.pop %v417
      %v424 = vrcp.pop %v420
      %v425 = vmul.f32 %v402, %v421
      %v426 = vmul.f32 %v404, %v422
      %v427 = vmul.f32 %v406, %v423
      %v428 = vmul.f32 %v408, %v424
      %v429 = vpack.c.bf16 %v425, %v425
      %v430 = vpack.c.bf16 %v426, %v426
      %v431 = vpack.c.bf16 %v427, %v427
      %v432 = vpack.c.bf16 %v428, %v428
      %433 = vrot.lane.b32.xlu0 %v188, 64
      %v434 = vpop.permute.xlu0 %433
      %v436 = vsel %vm384, %v429, 0
      %vm438 = vcmask 1043456
      %v440 = vsel %vm438, %v434, 0
      %442 = vmatprep.subr.bf16.mxu0 0
      %443 = vmatpush1.bf16.msra.mxu0 %v440
      %444 = vmatprep.subr.bf16.mxu0 0
      %445 = vmatpush1.bf16.msra.mxu0 0
      %446 = vmatprep.subr.bf16.mxu0 0
      %447 = vmatpush1.bf16.msra.mxu0 0
      %448 = vmatprep.subr.bf16.mxu0 0
      %449 = vmatpush1.bf16.msra.mxu0 0
      %450 = vmatprep.subr.bf16.mxu0 0
      %451 = vmatpush1.bf16.msra.mxu0 0
      %452 = vmatprep.subr.bf16.mxu0 0
      %453 = vmatpush1.bf16.msra.mxu0 0
      %454 = vmatprep.subr.bf16.mxu0 0
      %455 = vmatpush1.bf16.msra.mxu0 0
      %456 = vmatprep.subr.bf16.mxu0 0
      %457 = vmatpush1.bf16.msra.mxu0 0
      %458 = vmatprep.subr.bf16.mxu0 0
      %459 = vmatpush1.bf16.msra.mxu0 0
      %460 = vmatprep.subr.bf16.mxu0 0
      %461 = vmatpush1.bf16.msra.mxu0 0
      %462 = vmatprep.subr.bf16.mxu0 0
      %463 = vmatpush1.bf16.msra.mxu0 0
      %464 = vmatprep.subr.bf16.mxu0 0
      %465 = vmatpush1.bf16.msra.mxu0 0
      %466 = vmatprep.subr.bf16.mxu0 0
      %467 = vmatpush1.bf16.msra.mxu0 0
      %468 = vmatprep.subr.bf16.mxu0 0
      %469 = vmatpush1.bf16.msra.mxu0 0
      %470 = vmatprep.subr.bf16.mxu0 0
      %471 = vmatpush1.bf16.msra.mxu0 0
      %472 = vmatprep.subr.bf16.mxu0 0
      %473 = vmatpush1.bf16.msra.mxu0 0
      %474 = vmatprep.mubr.bf16.mxu0 0
      %475 = vmatmul.mubr.bf16.gmra.mrb[0].mxu0 %v436
      %v476 = vpop.f32.mrb[0].mxu0
      %v477 = vadd.f32 0.0, %v476
      %v478 = vpop.f32.mrb[0].mxu0
      %v479 = vpop.f32.mrb[0].mxu0
      %v480 = vpop.f32.mrb[0].mxu0
      %481 = vdwg.mxu0
      %482 = vrot.lane.b32.xlu0 %v189, 64
      %v483 = vpop.permute.xlu0 %482
      %v485 = vsel %vm384, %v430, 0
      %v488 = vsel %vm438, %v483, 0
      %490 = vmatprep.subr.bf16.mxu0 0
      %491 = vmatpush1.bf16.msra.mxu0 %v488
      %492 = vmatprep.subr.bf16.mxu0 0
      %493 = vmatpush1.bf16.msra.mxu0 0
      %494 = vmatprep.subr.bf16.mxu0 0
      %495 = vmatpush1.bf16.msra.mxu0 0
      %496 = vmatprep.subr.bf16.mxu0 0
      %497 = vmatpush1.bf16.msra.mxu0 0
      %498 = vmatprep.subr.bf16.mxu0 0
      %499 = vmatpush1.bf16.msra.mxu0 0
      %500 = vmatprep.subr.bf16.mxu0 0
      %501 = vmatpush1.bf16.msra.mxu0 0
      %502 = vmatprep.subr.bf16.mxu0 0
      %503 = vmatpush1.bf16.msra.mxu0 0
      %504 = vmatprep.subr.bf16.mxu0 0
      %505 = vmatpush1.bf16.msra.mxu0 0
      %506 = vmatprep.subr.bf16.mxu0 0
      %507 = vmatpush1.bf16.msra.mxu0 0
      %508 = vmatprep.subr.bf16.mxu0 0
      %509 = vmatpush1.bf16.msra.mxu0 0
      %510 = vmatprep.subr.bf16.mxu0 0
      %511 = vmatpush1.bf16.msra.mxu0 0
      %512 = vmatprep.subr.bf16.mxu0 0
      %513 = vmatpush1.bf16.msra.mxu0 0
      %514 = vmatprep.subr.bf16.mxu0 0
      %515 = vmatpush1.bf16.msra.mxu0 0
      %516 = vmatprep.subr.bf16.mxu0 0
      %517 = vmatpush1.bf16.msra.mxu0 0
      %518 = vmatprep.subr.bf16.mxu0 0
      %519 = vmatpush1.bf16.msra.mxu0 0
      %520 = vmatprep.subr.bf16.mxu0 0
      %521 = vmatpush1.bf16.msra.mxu0 0
      %522 = vmatprep.mubr.bf16.mxu0 0
      %523 = vmatmul.mubr.bf16.gmra.mrb[0].mxu0 %v485
      %v524 = vpop.f32.mrb[0].mxu0
      %v525 = vadd.f32 0.0, %v524
      %v526 = vpop.f32.mrb[0].mxu0
      %v527 = vpop.f32.mrb[0].mxu0
      %v528 = vpop.f32.mrb[0].mxu0
      %529 = vdwg.mxu0
      %530 = vrot.lane.b32.xlu0 %v190, 64
      %v531 = vpop.permute.xlu0 %530
      %v533 = vsel %vm384, %v431, 0
      %v536 = vsel %vm438, %v531, 0
      %538 = vmatprep.subr.bf16.mxu0 0
      %539 = vmatpush1.bf16.msra.mxu0 %v536
      %540 = vmatprep.subr.bf16.mxu0 0
      %541 = vmatpush1.bf16.msra.mxu0 0
      %542 = vmatprep.subr.bf16.mxu0 0
      %543 = vmatpush1.bf16.msra.mxu0 0
      %544 = vmatprep.subr.bf16.mxu0 0
      %545 = vmatpush1.bf16.msra.mxu0 0
      %546 = vmatprep.subr.bf16.mxu0 0
      %547 = vmatpush1.bf16.msra.mxu0 0
      %548 = vmatprep.subr.bf16.mxu0 0
      %549 = vmatpush1.bf16.msra.mxu0 0
      %550 = vmatprep.subr.bf16.mxu0 0
      %551 = vmatpush1.bf16.msra.mxu0 0
      %552 = vmatprep.subr.bf16.mxu0 0
      %553 = vmatpush1.bf16.msra.mxu0 0
      %554 = vmatprep.subr.bf16.mxu0 0
      %555 = vmatpush1.bf16.msra.mxu0 0
      %556 = vmatprep.subr.bf16.mxu0 0
      %557 = vmatpush1.bf16.msra.mxu0 0
      %558 = vmatprep.subr.bf16.mxu0 0
      %559 = vmatpush1.bf16.msra.mxu0 0
      %560 = vmatprep.subr.bf16.mxu0 0
      %561 = vmatpush1.bf16.msra.mxu0 0
      %562 = vmatprep.subr.bf16.mxu0 0
      %563 = vmatpush1.bf16.msra.mxu0 0
      %564 = vmatprep.subr.bf16.mxu0 0
      %565 = vmatpush1.bf16.msra.mxu0 0
      %566 = vmatprep.subr.bf16.mxu0 0
      %567 = vmatpush1.bf16.msra.mxu0 0
      %568 = vmatprep.subr.bf16.mxu0 0
      %569 = vmatpush1.bf16.msra.mxu0 0
      %570 = vmatprep.mubr.bf16.mxu0 0
      %571 = vmatmul.mubr.bf16.gmra.mrb[0].mxu0 %v533
      %v572 = vpop.f32.mrb[0].mxu0
      %v573 = vadd.f32 0.0, %v572
      %v574 = vpop.f32.mrb[0].mxu0
      %v575 = vpop.f32.mrb[0].mxu0
      %v576 = vpop.f32.mrb[0].mxu0
      %577 = vdwg.mxu0
      %578 = vrot.lane.b32.xlu0 %v191, 64
      %v579 = vpop.permute.xlu0 %578
      %v581 = vsel %vm384, %v432, 0
      %v584 = vsel %vm438, %v579, 0
      %586 = vmatprep.subr.bf16.mxu0 0
      %587 = vmatpush1.bf16.msra.mxu0 %v584
      %588 = vmatprep.subr.bf16.mxu0 0
      %589 = vmatpush1.bf16.msra.mxu0 0
      %590 = vmatprep.subr.bf16.mxu0 0
      %591 = vmatpush1.bf16.msra.mxu0 0
      %592 = vmatprep.subr.bf16.mxu0 0
      %593 = vmatpush1.bf16.msra.mxu0 0
      %594 = vmatprep.subr.bf16.mxu0 0
      %595 = vmatpush1.bf16.msra.mxu0 0
      %596 = vmatprep.subr.bf16.mxu0 0
      %597 = vmatpush1.bf16.msra.mxu0 0
      %598 = vmatprep.subr.bf16.mxu0 0
      %599 = vmatpush1.bf16.msra.mxu0 0
      %600 = vmatprep.subr.bf16.mxu0 0
      %601 = vmatpush1.bf16.msra.mxu0 0
      %602 = vmatprep.subr.bf16.mxu0 0
      %603 = vmatpush1.bf16.msra.mxu0 0
      %604 = vmatprep.subr.bf16.mxu0 0
      %605 = vmatpush1.bf16.msra.mxu0 0
      %606 = vmatprep.subr.bf16.mxu0 0
      %607 = vmatpush1.bf16.msra.mxu0 0
      %608 = vmatprep.subr.bf16.mxu0 0
      %609 = vmatpush1.bf16.msra.mxu0 0
      %610 = vmatprep.subr.bf16.mxu0 0
      %611 = vmatpush1.bf16.msra.mxu0 0
      %612 = vmatprep.subr.bf16.mxu0 0
      %613 = vmatpush1.bf16.msra.mxu0 0
      %614 = vmatprep.subr.bf16.mxu0 0
      %615 = vmatpush1.bf16.msra.mxu0 0
      %616 = vmatprep.subr.bf16.mxu0 0
      %617 = vmatpush1.bf16.msra.mxu0 0
      %618 = vmatprep.mubr.bf16.mxu0 0
      %619 = vmatmul.mubr.bf16.gmra.mrb[0].mxu0 %v581
      %v620 = vpop.f32.mrb[0].mxu0
      %v621 = vadd.f32 0.0, %v620
      %v622 = vpop.f32.mrb[0].mxu0
      %v623 = vpop.f32.mrb[0].mxu0
      %v624 = vpop.f32.mrb[0].mxu0
      %625 = vdwg.mxu0
      %v626 = vpack.c.bf16 %v477, %v477
      %v627 = vpack.c.bf16 %v525, %v525
      %v628 = vpack.c.bf16 %v573, %v573
      %v629 = vpack.c.bf16 %v621, %v621
      %v630 = vld [vmem:[#allocation8] sm:$0xf]
      %v631 = vld [vmem:[#allocation8 + $0x4] sm:$0xf]
      %v632 = vld [vmem:[#allocation8 + $0x8] sm:$0xf]
      %v633 = vld [vmem:[#allocation8 + $0xc] sm:$0xf]
      %v634 = vld [vmem:[%s4] sm:$0x1]
      %v636 = vlaneseq
      %v637 = vshrl.u32 %v636, 7
      %v638 = vsub.s32 0, %v637
      %v639 = vrot.slane %v634, %v638
      %v645 = vunpack.c.l.b16 %v626
      %v646 = vunpack.c.l.b16 %v627
      %v647 = vunpack.c.l.b16 %v628
      %v648 = vunpack.c.l.b16 %v629
      %v649 = vpack.c.b16 %v646, %v645
      %v650 = vpack.c.b16 %v648, %v647
      %v655 = vunpack.c.l.b16 %v630
      %v656 = vunpack.c.l.b16 %v631
      %v657 = vunpack.c.l.b16 %v632
      %v658 = vunpack.c.l.b16 %v633
      %v659 = vpack.c.b16 %v656, %v655
      %v660 = vpack.c.b16 %v658, %v657
      %v664 = vsel %vm124, %v649, 0
      %v667 = vsel %vm124, %v650, 0
      %669 = vmatprep.subr.bf16.mxu0 0
      %670 = vmatpush1.bf16.msra.mxu0 %v659
      %671 = vmatprep.subr.bf16.mxu0 0
      %672 = vmatpush1.bf16.msra.mxu0 %v660
      %673 = vmatprep.subr.bf16.mxu0 0
      %674 = vmatpush1.bf16.msra.mxu0 0
      %675 = vmatprep.subr.bf16.mxu0 0
      %676 = vmatpush1.bf16.msra.mxu0 0
      %677 = vmatprep.subr.bf16.mxu0 0
      %678 = vmatpush1.bf16.msra.mxu0 0
      %679 = vmatprep.subr.bf16.mxu0 0
      %680 = vmatpush1.bf16.msra.mxu0 0
      %681 = vmatprep.subr.bf16.mxu0 0
      %682 = vmatpush1.bf16.msra.mxu0 0
      %683 = vmatprep.subr.bf16.mxu0 0
      %684 = vmatpush1.bf16.msra.mxu0 0
      %685 = vmatprep.subr.bf16.mxu0 0
      %686 = vmatpush1.bf16.msra.mxu0 0
      %687 = vmatprep.subr.bf16.mxu0 0
      %688 = vmatpush1.bf16.msra.mxu0 0
      %689 = vmatprep.subr.bf16.mxu0 0
      %690 = vmatpush1.bf16.msra.mxu0 0
      %691 = vmatprep.subr.bf16.mxu0 0
      %692 = vmatpush1.bf16.msra.mxu0 0
      %693 = vmatprep.subr.bf16.mxu0 0
      %694 = vmatpush1.bf16.msra.mxu0 0
      %695 = vmatprep.subr.bf16.mxu0 0
      %696 = vmatpush1.bf16.msra.mxu0 0
      %697 = vmatprep.subr.bf16.mxu0 0
      %698 = vmatpush1.bf16.msra.mxu0 0
      %699 = vmatprep.subr.bf16.mxu0 0
      %700 = vmatpush1.bf16.msra.mxu0 0
      %701 = vmatprep.mubr.bf16.mxu0 0
      %702 = vmatmul.mubr.bf16.gmra.mrb[0].mxu0 %v664
      %v703 = vpop.f32.mrb[0].mxu0
      %v704 = vadd.f32 %v639, %v703
      %v705 = vpop.f32.mrb[0].mxu0
      %v706 = vpop.f32.mrb[0].mxu0
      %v707 = vadd.f32 %v639, %v706
      %v708 = vpop.f32.mrb[0].mxu0
      %709 = vmatprep.mubr.bf16.mxu0 0
      %710 = vmatmul.mubr.bf16.gmra.mrb[0].mxu0 %v667
      %v711 = vpop.f32.mrb[0].mxu0
      %v712 = vadd.f32 %v639, %v711
      %v713 = vpop.f32.mrb[0].mxu0
      %v714 = vpop.f32.mrb[0].mxu0
      %v715 = vadd.f32 %v639, %v714
      %v716 = vpop.f32.mrb[0].mxu0
      %717 = vdwg.mxu0
      %v718 = vpack.c.bf16 %v707, %v704
      %v719 = vpack.c.bf16 %v715, %v712
      %720 = vst.msk [vmem:[#allocation2] sm:$0xff] %vm124, %v718
      %721 = vst.msk [vmem:[#allocation2 + $0x8] sm:$0xff] %vm124, %v719
    $region49: #{tpu_custom_call.1} parent=1 // pred_fallthru
      _
    %v722 = vld [vmem:[#allocation2] sm:$0xff]
    %v723 = vld [vmem:[#allocation2 + $0x8] sm:$0xff]
    %v724 = vld [vmem:[#allocation9] sm:$0xff]
    %v725 = vld [vmem:[#allocation9 + $0x8] sm:$0xf]
    %v726 = vld [vmem:[#allocation9 + $0xc] sm:$0xff]
    %v727 = vld [vmem:[#allocation9 + $0x14] sm:$0xf]
    %v728 = vld [vmem:[#allocation9 + $0x18] sm:$0xff]
    %v729 = vld [vmem:[#allocation9 + $0x20] sm:$0xf]
    %v730 = vld [vmem:[#allocation9 + $0x24] sm:$0xff]
    %v731 = vld [vmem:[#allocation9 + $0x2c] sm:$0xf]
    %v732 = vld [vmem:[%s6] sm:$0x7]
    %v734 = vlaneseq
    %v735 = vshrl.u32 %v734, 7
    %v736 = vsub.s32 0, %v735
    %v737 = vrot.slane %v732, %v736
    %v738 = vlaneseq
    %v739 = vshrl.u32 %v738, 7
    %v740 = vsub.s32 1, %v739
    %v741 = vrot.slane %v732, %v740
    %v742 = vlaneseq
    %v743 = vshrl.u32 %v742, 7
    %v744 = vsub.s32 2, %v743
    %v745 = vrot.slane %v732, %v744
    %v757 = vunpack.c.l.b16 %v724
    %v758 = vunpack.c.h.b16 %v724
    %v759 = vunpack.c.l.b16 %v725
    %v760 = vunpack.c.l.b16 %v726
    %v761 = vunpack.c.h.b16 %v726
    %v762 = vunpack.c.l.b16 %v727
    %v763 = vunpack.c.l.b16 %v728
    %v764 = vunpack.c.h.b16 %v728
    %v765 = vunpack.c.l.b16 %v729
    %v766 = vunpack.c.l.b16 %v730
    %v767 = vunpack.c.h.b16 %v730
    %v768 = vunpack.c.l.b16 %v731
    %v769 = vpack.c.b16 %v760, %v757
    %v770 = vpack.c.b16 %v761, %v758
    %v771 = vpack.c.b16 %v762, %v759
    %v772 = vpack.c.b16 %v766, %v763
    %v773 = vpack.c.b16 %v767, %v764
    %v774 = vpack.c.b16 %v768, %v765
    %vm781 = vcmask 261120
    %v783 = vsel %vm781, %v722, 0
    %v786 = vsel %vm781, %v723, 0
    %788 = vmatprep.subr.bf16.mxu0 %v770
    %789 = vmatpush1.bf16.msra.mxu0 %v769
    %790 = vmatprep.subr.bf16.mxu0 %v773
    %791 = vmatpush1.bf16.msra.mxu0 %v772
    %792 = vmatprep.subr.bf16.mxu0 0
    %793 = vmatpush1.bf16.msra.mxu0 0
    %794 = vmatprep.subr.bf16.mxu0 0
    %795 = vmatpush1.bf16.msra.mxu0 0
    %796 = vmatprep.subr.bf16.mxu0 0
    %797 = vmatpush1.bf16.msra.mxu0 0
    %798 = vmatprep.subr.bf16.mxu0 0
    %799 = vmatpush1.bf16.msra.mxu0 0
    %800 = vmatprep.subr.bf16.mxu0 0
    %801 = vmatpush1.bf16.msra.mxu0 0
    %802 = vmatprep.subr.bf16.mxu0 0
    %803 = vmatpush1.bf16.msra.mxu0 0
    %804 = vmatprep.subr.bf16.mxu0 0
    %805 = vmatpush1.bf16.msra.mxu0 0
    %806 = vmatprep.subr.bf16.mxu0 0
    %807 = vmatpush1.bf16.msra.mxu0 0
    %808 = vmatprep.subr.bf16.mxu0 0
    %809 = vmatpush1.bf16.msra.mxu0 0
    %810 = vmatprep.subr.bf16.mxu0 0
    %811 = vmatpush1.bf16.msra.mxu0 0
    %812 = vmatprep.subr.bf16.mxu0 0
    %813 = vmatpush1.bf16.msra.mxu0 0
    %814 = vmatprep.subr.bf16.mxu0 0
    %815 = vmatpush1.bf16.msra.mxu0 0
    %816 = vmatprep.subr.bf16.mxu0 0
    %817 = vmatpush1.bf16.msra.mxu0 0
    %818 = vmatprep.subr.bf16.mxu0 0
    %819 = vmatpush1.bf16.msra.mxu0 0
    %820 = vmatprep.mubr.bf16.mxu0 0
    %821 = vmatmul.mubr.bf16.gmra.mrb[0].mxu0 %v783
    %v822 = vpop.f32.mrb[0].mxu0
    %v823 = vadd.f32 %v737, %v822
    %v824 = vpop.f32.mrb[0].mxu0
    %v825 = vadd.f32 %v741, %v824
    %v826 = vpop.f32.mrb[0].mxu0
    %v827 = vadd.f32 %v737, %v826
    %v828 = vpop.f32.mrb[0].mxu0
    %v829 = vadd.f32 %v741, %v828
    %830 = vmatprep.mubr.bf16.mxu0 0
    %831 = vmatmul.mubr.bf16.gmra.mrb[0].mxu0 %v786
    %v832 = vpop.f32.mrb[0].mxu0
    %v833 = vadd.f32 %v737, %v832
    %v834 = vpop.f32.mrb[0].mxu0
    %v835 = vadd.f32 %v741, %v834
    %v836 = vpop.f32.mrb[0].mxu0
    %v837 = vadd.f32 %v737, %v836
    %v838 = vpop.f32.mrb[0].mxu0
    %v839 = vadd.f32 %v741, %v838
    %840 = vdwg.mxu0
    %841 = vmatprep.subr.bf16.mxu0 0
    %842 = vmatpush1.bf16.msra.mxu0 %v771
    %843 = vmatprep.subr.bf16.mxu0 0
    %844 = vmatpush1.bf16.msra.mxu0 %v774
    %845 = vmatprep.subr.bf16.mxu0 0
    %846 = vmatpush1.bf16.msra.mxu0 0
    %847 = vmatprep.subr.bf16.mxu0 0
    %848 = vmatpush1.bf16.msra.mxu0 0
    %849 = vmatprep.subr.bf16.mxu0 0
    %850 = vmatpush1.bf16.msra.mxu0 0
    %851 = vmatprep.subr.bf16.mxu0 0
    %852 = vmatpush1.bf16.msra.mxu0 0
    %853 = vmatprep.subr.bf16.mxu0 0
    %854 = vmatpush1.bf16.msra.mxu0 0
    %855 = vmatprep.subr.bf16.mxu0 0
    %856 = vmatpush1.bf16.msra.mxu0 0
    %857 = vmatprep.subr.bf16.mxu0 0
    %858 = vmatpush1.bf16.msra.mxu0 0
    %859 = vmatprep.subr.bf16.mxu0 0
    %860 = vmatpush1.bf16.msra.mxu0 0
    %861 = vmatprep.subr.bf16.mxu0 0
    %862 = vmatpush1.bf16.msra.mxu0 0
    %863 = vmatprep.subr.bf16.mxu0 0
    %864 = vmatpush1.bf16.msra.mxu0 0
    %865 = vmatprep.subr.bf16.mxu0 0
    %866 = vmatpush1.bf16.msra.mxu0 0
    %867 = vmatprep.subr.bf16.mxu0 0
    %868 = vmatpush1.bf16.msra.mxu0 0
    %869 = vmatprep.subr.bf16.mxu0 0
    %870 = vmatpush1.bf16.msra.mxu0 0
    %871 = vmatprep.subr.bf16.mxu0 0
    %872 = vmatpush1.bf16.msra.mxu0 0
    %873 = vmatprep.mubr.bf16.mxu0 0
    %874 = vmatmul.mubr.bf16.gmra.mrb[0].mxu0 %v783
    %v875 = vpop.f32.mrb[0].mxu0
    %v876 = vadd.f32 %v745, %v875
    %v877 = vpop.f32.mrb[0].mxu0
    %v878 = vpop.f32.mrb[0].mxu0
    %v879 = vadd.f32 %v745, %v878
    %v880 = vpop.f32.mrb[0].mxu0
    %881 = vmatprep.mubr.bf16.mxu0 0
    %882 = vmatmul.mubr.bf16.gmra.mrb[0].mxu0 %v786
    %v883 = vpop.f32.mrb[0].mxu0
    %v884 = vadd.f32 %v745, %v883
    %v885 = vpop.f32.mrb[0].mxu0
    %v886 = vpop.f32.mrb[0].mxu0
    %v887 = vadd.f32 %v745, %v886
    %v888 = vpop.f32.mrb[0].mxu0
    %889 = vdwg.mxu0
    %890 = vst [vmem:[#allocation11] sm:$0xff] %v823
    %891 = vst [vmem:[#allocation11 + $0x8] sm:$0xff] %v825
    %892 = vst [vmem:[#allocation11 + $0x10] sm:$0xff] %v876
    %893 = vst [vmem:[#allocation11 + $0x18] sm:$0xff] %v827
    %894 = vst [vmem:[#allocation11 + $0x20] sm:$0xff] %v829
    %895 = vst [vmem:[#allocation11 + $0x28] sm:$0xff] %v879
    %896 = vst [vmem:[#allocation11 + $0x30] sm:$0xff] %v833
    %897 = vst [vmem:[#allocation11 + $0x38] sm:$0xff] %v835
    %898 = vst [vmem:[#allocation11 + $0x40] sm:$0xff] %v884
    %899 = vst [vmem:[#allocation11 + $0x48] sm:$0xff] %v837
    %900 = vst [vmem:[#allocation11 + $0x50] sm:$0xff] %v839
    %901 = vst [vmem:[#allocation11 + $0x58] sm:$0xff] %v887
    // Predicated region
    $region50: #{tpu_custom_call.1} parent=1 // pred_check
      _
    $region51: #{tpu_custom_call.1} parent=1 // pred_check_branch
      %903 = sbr.rel (0) target = $region53
    $region52: #{tpu_custom_call.1} parent=1 // pred_region
      %s905 = ssub.s32 1536, 1536
      %906 = vsyncadd [#allocation5], %s905
      %s907 = sshll.u32 [#allocation11], 4
      %s908 = int_to_ptr.vmem [resolvable:$true] %s907
      %913 = dma.vmem_to_hbm [thread:$0]  %s908, 1536, %s7, [#allocation5], 384, 384, 24
    $region53: #{tpu_custom_call.1} parent=1 // pred_fallthru
      _
    // Predicated region
    $region54: #{tpu_custom_call.1} parent=1 // pred_check
      _
    $region55: #{tpu_custom_call.1} parent=1 // pred_check_branch
      %915 = sbr.rel (0) target = $region57
    $region56: #{tpu_custom_call.1} parent=1 // pred_region
      %916 = dma.done [#allocation5], 1536
    $region57: #{tpu_custom_call.1} parent=1 // pred_fallthru
      _
    %917 = vsyncpa [#allocation4], 1
    %918 = vsyncpa [#allocation7], 1
    %919 = vsyncpa [#allocation10], 1
    %920 = vsyncpa [#allocation5], 1

</llo_original>
